<compile_context>
chip_gen: v7x
topology: tpu7x:2x2x1
jax: 0.10.0
libtpu: 0.0.40
codegen_flags: <defaults>
</compile_context>

<pallas_src>
import jax
import jax.numpy as jnp
from jax.experimental import pallas as pl
from jax.experimental.pallas import tpu as pltpu

FEATURES = 16          # must be divisible by GROUPS
GROUPS = 8
KSIZE = 3
KK = KSIZE * KSIZE     # 9
OFF_CH = 2 * KK        # 18
PAD = 1

# Set to jnp.bfloat16 on v6e/v7x to halve HBM/VMEM traffic of the matmul
# operands; kept f32 by default to match reference numerics.
MXU_DTYPE = jnp.float32


# ----------------------------------------------------------------------------
# Pallas kernel 1: offset conv (im2col matmul) + bias + PReLU, fused, M-tiled.
# ----------------------------------------------------------------------------
def _offset_conv_prelu_kernel(cols_ref, w_ref, b_ref, alpha_ref, o_ref):
    # cols: (TILE_M, C*9)   w: (C*9, 18)   b: (1, 18)   alpha: SMEM (1,)
    y = jnp.dot(cols_ref[...], w_ref[...], preferred_element_type=jnp.float32)
    y = y + b_ref[...]
    alpha = alpha_ref[0]                       # scalar from SMEM (free path)
    o_ref[...] = jnp.where(y > 0.0, y, alpha * y)


def offset_conv_prelu(cols, w, b, alpha, tile_m):
    m_pad, k = cols.shape
    cout = w.shape[1]
    cost = pl.CostEstimate(
        flops=int(2 * m_pad * k * cout),
        transcendentals=0,
        bytes_accessed=int(cols.size * cols.dtype.itemsize
                           + w.size * w.dtype.itemsize
                           + 4 * m_pad * cout),
    )
    return pl.pallas_call(
        _offset_conv_prelu_kernel,
        out_shape=jax.ShapeDtypeStruct((m_pad, cout), jnp.float32),
        grid=(m_pad // tile_m,),
        in_specs=[
            pl.BlockSpec((tile_m, k), lambda i: (i, 0)),
            pl.BlockSpec((k, cout), lambda i: (0, 0)),
            pl.BlockSpec((1, cout), lambda i: (0, 0)),
            pl.BlockSpec(memory_space=pltpu.MemorySpace.SMEM),
        ],
        out_specs=pl.BlockSpec((tile_m, cout), lambda i: (i, 0)),
        compiler_params=pltpu.CompilerParams(dimension_semantics=("parallel",)),
        cost_estimate=cost,
    )(cols, w, b.reshape(1, cout).astype(jnp.float32),
      alpha.reshape(1).astype(jnp.float32))


# ----------------------------------------------------------------------------
# Pallas kernel 2: grouped deformable contraction as ONE block-diagonal
# matmul (zero-filled off-diagonal weight), + bias, M-tiled.
# ----------------------------------------------------------------------------
def _deform_matmul_kernel(a_ref, w_ref, b_ref, o_ref):
    # a: (TILE_M, C*9)   w: block-diag (C*9, 16)   b: (1, 16)
    acc = jnp.dot(a_ref[...], w_ref[...], preferred_element_type=jnp.float32)
    o_ref[...] = acc + b_ref[...]


def deform_matmul(a, w_bd, b, tile_m):
    m_pad, k = a.shape
    cout = w_bd.shape[1]
    cost = pl.CostEstimate(
        flops=int(2 * m_pad * k * cout),
        transcendentals=0,
        bytes_accessed=int(a.size * a.dtype.itemsize
                           + w_bd.size * w_bd.dtype.itemsize
                           + 4 * m_pad * cout),
    )
    return pl.pallas_call(
        _deform_matmul_kernel,
        out_shape=jax.ShapeDtypeStruct((m_pad, cout), jnp.float32),
        grid=(m_pad // tile_m,),
        in_specs=[
            pl.BlockSpec((tile_m, k), lambda i: (i, 0)),
            pl.BlockSpec((k, cout), lambda i: (0, 0)),
            pl.BlockSpec((1, cout), lambda i: (0, 0)),
        ],
        out_specs=pl.BlockSpec((tile_m, cout), lambda i: (i, 0)),
        compiler_params=pltpu.CompilerParams(dimension_semantics=("parallel",)),
        cost_estimate=cost,
    )(a, w_bd, b.reshape(1, cout).astype(jnp.float32))


# ----------------------------------------------------------------------------
# Helpers (tiling / padding / bilinear sampling glue).
# ----------------------------------------------------------------------------
def _pick_tile_m(m):
    # Biggest tile that still gives >= 2 pipelined grid steps; tiles here are
    # small (~1-2 MiB double-buffered), well under the default VMEM limit.
    for t in (2048, 1024, 512, 256):
        if m >= 2 * t:
            return t
    return 256


def _pad_rows(a, m_pad):
    m = a.shape[0]
    if m == m_pad:
        return a
    return jnp.pad(a, ((0, m_pad - m),) + ((0, 0),) * (a.ndim - 1))


def _bilinear_sample_nhwc(x_nhwc, off_flat):
    # TODO(synk): data-dependent bilinear gather has no clean Pallas/TPU
    # equivalent (per-element dynamic indices) -> plain JAX, but arranged
    # channel-last and (kk, c)-ordered so the gather + weighting fuse in XLA
    # and the result feeds the Pallas kernel with no transpose.
    # x_nhwc: (N, H, W, C); off_flat: (M, 18), channel = 2*kk + {0: dy, 1: dx}
    N, H, W, C = x_nhwc.shape
    f32 = jnp.float32
    off = off_flat.reshape(N, H, W, KK, 2)
    dy = off[..., 0]                                     # (N, H, W, KK)
    dx = off[..., 1]

    ki = (jnp.arange(KK) // KSIZE).astype(f32)           # kernel row
    kj = (jnp.arange(KK) % KSIZE).astype(f32)            # kernel col
    hh = jnp.arange(H, dtype=f32)
    ww = jnp.arange(W, dtype=f32)
    base_y = hh[:, None] - float(PAD) + ki[None, :]      # (H, KK)
    base_x = ww[:, None] - float(PAD) + kj[None, :]      # (W, KK)
    py = base_y[None, :, None, :] + dy                   # (N, H, W, KK)
    px = base_x[None, None, :, :] + dx

    valid = ((py > -1.0) & (py < H) & (px > -1.0) & (px < W)).astype(f32)

    y0 = jnp.floor(py)
    x0 = jnp.floor(px)
    ly = py - y0
    lx = px - x0
    hy = 1.0 - ly
    hx = 1.0 - lx
    y0i = y0.astype(jnp.int32)
    x0i = x0.astype(jnp.int32)
    y1i = y0i + 1
    x1i = x0i + 1

    m_y0 = (y0i >= 0).astype(f32)
    m_y1 = (y1i <= H - 1).astype(f32)
    m_x0 = (x0i >= 0).astype(f32)
    m_x1 = (x1i <= W - 1).astype(f32)
    w00 = hy * hx * m_y0 * m_x0
    w01 = hy * lx * m_y0 * m_x1
    w10 = ly * hx * m_y1 * m_x0
    w11 = ly * lx * m_y1 * m_x1

    xf = x_nhwc.reshape(N, H * W, C)

    def gather(yi, xi):
        # channel-last gather: one index per (pixel, tap) fetches all C lanes.
        yc = jnp.clip(yi, 0, H - 1)
        xc = jnp.clip(xi, 0, W - 1)
        idx = (yc * W + xc).reshape(N, H * W * KK, 1)
        g = jnp.take_along_axis(xf, idx, axis=1)          # (N, H*W*KK, C)
        return g.reshape(N, H, W, KK, C)

    v00 = gather(y0i, x0i)
    v01 = gather(y0i, x1i)
    v10 = gather(y1i, x0i)
    v11 = gather(y1i, x1i)

    sampled = (w00[..., None] * v00 + w01[..., None] * v01 +
               w10[..., None] * v10 + w11[..., None] * v11) * valid[..., None]
    return sampled.reshape(N * H * W, KK * C)             # (M, 144), (kk,c)-order


# ----------------------------------------------------------------------------
# Full forward pass.
# ----------------------------------------------------------------------------
def deform_conv_forward(x, params):
    N, C, H, W = x.shape
    assert C == FEATURES and C % GROUPS == 0
    M = N * H * W
    tile_m = _pick_tile_m(M)
    m_pad = pl.cdiv(M, tile_m) * tile_m

    # single small-tensor NCHW -> NHWC transpose; everything else stays NHWC.
    x_nhwc = jnp.transpose(x, (0, 2, 3, 1))               # (N, H, W, C)
    xp = jnp.pad(x_nhwc, ((0, 0), (1, 1), (1, 1), (0, 0)))

    # --- offset branch: Conv2d(C -> 18, k3, p1) + PReLU (Pallas, M-tiled) ---
    # TODO(synk): im2col still materializes a 9x copy of x in HBM; fully fusing
    # it requires overlapping halo (element-indexed) input blocks.
    patches = jnp.stack(
        [xp[:, i:i + H, j:j + W, :] for i in range(KSIZE) for j in range(KSIZE)],
        axis=3)                                           # (N, H, W, 9, C)
    cols = patches.reshape(M, KK * C).astype(MXU_DTYPE)   # (M, 144), (kk,c)-order
    w_off = (params["offset_w"].transpose(2, 3, 1, 0)     # (3, 3, C, 18)
             .reshape(KK * C, OFF_CH).astype(MXU_DTYPE))
    off_flat = offset_conv_prelu(
        _pad_rows(cols, m_pad), w_off,
        params["offset_b"], params["prelu_alpha"], tile_m)[:M]   # (M, 18) f32

    # --- deformable bilinear sampling (JAX gather glue, layout-matched) ---
    sampled = _bilinear_sample_nhwc(x_nhwc, off_flat)     # (M, 144)

    # --- grouped contraction as one block-diagonal matmul (Pallas) ---
    cpg = C // GROUPS
    copg = FEATURES // GROUPS
    w_g = (params["deform_w"].reshape(GROUPS, copg, cpg, KK)
           .transpose(3, 0, 2, 1))                        # (KK, G, cpg, copg)
    w_bd = jnp.einsum("kgco,gh->kgcho", w_g, jnp.eye(GROUPS, dtype=w_g.dtype))
    w_bd = w_bd.reshape(KK * C, FEATURES).astype(MXU_DTYPE)     # (144, 16)
    out_flat = deform_matmul(_pad_rows(sampled.astype(MXU_DTYPE), m_pad),
                             w_bd, params["deform_b"], tile_m)[:M]   # (M, 16)

    out = out_flat.reshape(N, H, W, FEATURES).transpose(0, 3, 1, 2)  # NCHW
    return out


# ----------------------------------------------------------------------------
# Deterministic parameter init + demo run.
# ----------------------------------------------------------------------------
def init_params(key):
    k1, k2, k3, k4 = jax.random.split(key, 4)
    return {
        # Conv2d(features -> 18, k3): weight (18, C, 3, 3), bias (18,)
        "offset_w": 0.1 * jax.random.normal(k1, (OFF_CH, FEATURES, KSIZE, KSIZE), jnp.float32),
        "offset_b": 0.1 * jax.random.normal(k2, (OFF_CH,), jnp.float32),
        # DeformConv2d(features -> features, k3, groups=8):
        #   weight (Cout, Cin/groups, 3, 3), bias (Cout,)
        "deform_w": 0.1 * jax.random.normal(k3, (FEATURES, FEATURES // GROUPS, KSIZE, KSIZE), jnp.float32),
        "deform_b": 0.1 * jax.random.normal(k4, (FEATURES,), jnp.float32),
        # nn.PReLU() default: single alpha = 0.25
        "prelu_alpha": jnp.array(0.25, jnp.float32),
    }


if __name__ == "__main__":
    key = jax.random.PRNGKey(0)
    kp, kx = jax.random.split(key)
    params = init_params(kp)
    x = jax.random.normal(kx, (2, FEATURES, 16, 16), jnp.float32)   # NCHW

    out = jax.jit(deform_conv_forward)(x, params)
    out = jax.block_until_ready(out)
    assert out.shape == (2, FEATURES, 16, 16)
    assert bool(jnp.all(jnp.isfinite(out)))
    print("KERNEL_OK")
</pallas_src>

<mosaic_0001>
module attributes {stable_mosaic.version = 11 : i64} {
  func.func @_offset_conv_prelu_kernel(%arg0: i32, %arg1: memref<256x144xf32, #tpu.memory_space<vmem>>, %arg2: memref<144x18xf32, #tpu.memory_space<vmem>>, %arg3: memref<1x18xf32, #tpu.memory_space<vmem>>, %arg4: memref<1xf32, #tpu.memory_space<smem>>, %arg5: memref<256x18xf32, #tpu.memory_space<vmem>>) attributes {dimension_semantics = [#tpu.dimension_semantics<parallel>], iteration_bounds = array<i64: 2>, scalar_prefetch = 0 : i64, scratch_operands = 0 : i64, tpu.core_type = #tpu.core_type<tc>, window_params = [{transform_indices = @transform_0, window_bounds = array<i64: 256, 144>}, {pipeline_mode = #tpu.pipeline_mode<synchronous>, transform_indices = @transform_1, window_bounds = array<i64: 144, 18>}, {pipeline_mode = #tpu.pipeline_mode<synchronous>, transform_indices = @transform_2, window_bounds = array<i64: 1, 18>}, {transform_indices = @transform_3, window_bounds = array<i64: 1>}, {transform_indices = @transform_4, window_bounds = array<i64: 256, 18>}]} {
    %c0 = arith.constant 0 : index
    %c0_0 = arith.constant 0 : index
    %0 = vector.load %arg1[%c0, %c0_0] : memref<256x144xf32, #tpu.memory_space<vmem>>, vector<256x144xf32>
    %c0_1 = arith.constant 0 : index
    %c0_2 = arith.constant 0 : index
    %1 = vector.load %arg2[%c0_1, %c0_2] : memref<144x18xf32, #tpu.memory_space<vmem>>, vector<144x18xf32>
    %cst = arith.constant dense<0.000000e+00> : vector<256x18xf32>
    %2 = tpu.matmul %0, %1, %cst {dimension_numbers = #tpu.dot_dimension_numbers<[1], [0], [0], [1], [0, 0, 1, 1], [], []>} : vector<256x144xf32>, vector<144x18xf32>, vector<256x18xf32> -> vector<256x18xf32>
    %c0_3 = arith.constant 0 : index
    %c0_4 = arith.constant 0 : index
    %3 = vector.load %arg3[%c0_3, %c0_4] : memref<1x18xf32, #tpu.memory_space<vmem>>, vector<1x18xf32>
    %4 = vector.broadcast %3 : vector<1x18xf32> to vector<256x18xf32>
    %5 = arith.addf %2, %4 : vector<256x18xf32>
    %c0_5 = arith.constant 0 : index
    %6 = memref.load %arg4[%c0_5] : memref<1xf32, #tpu.memory_space<smem>>
    %cst_6 = arith.constant 0.000000e+00 : f32
    %7 = vector.broadcast %cst_6 : f32 to vector<256x18xf32>
    %8 = arith.cmpf ogt, %5, %7 : vector<256x18xf32>
    %9 = vector.broadcast %6 : f32 to vector<256x18xf32>
    %10 = arith.mulf %9, %5 : vector<256x18xf32>
    %11 = arith.select %8, %5, %10 : vector<256x18xi1>, vector<256x18xf32>
    %c0_7 = arith.constant 0 : index
    %c0_8 = arith.constant 0 : index
    %12 = vector.load %arg5[%c0_7, %c0_8] : memref<256x18xf32, #tpu.memory_space<vmem>>, vector<256x18xf32>
    tpu.vector_store %arg5[%c0_7, %c0_8], %11 {strides = array<i32>} : memref<256x18xf32, #tpu.memory_space<vmem>>, vector<256x18xf32>,
    return
  }
  func.func @transform_0(%arg0: i32) -> (i32, i32) {
    %c0_i32 = arith.constant 0 : i32
    %c0_i32_0 = arith.constant 0 : i32
    return %arg0, %c0_i32 : i32, i32
  }
  func.func @transform_1(%arg0: i32) -> (i32, i32) {
    %c0_i32 = arith.constant 0 : i32
    %c0_i32_0 = arith.constant 0 : i32
    %c0_i32_1 = arith.constant 0 : i32
    return %c0_i32, %c0_i32_0 : i32, i32
  }
  func.func @transform_2(%arg0: i32) -> (i32, i32) {
    %c0_i32 = arith.constant 0 : i32
    %c0_i32_0 = arith.constant 0 : i32
    %c0_i32_1 = arith.constant 0 : i32
    return %c0_i32, %c0_i32_0 : i32, i32
  }
  func.func @transform_3(%arg0: i32) -> i32 {
    %c0_i32 = arith.constant 0 : i32
    %c0_i32_0 = arith.constant 0 : i32
    return %c0_i32 : i32
  }
  func.func @transform_4(%arg0: i32) -> (i32, i32) {
    %c0_i32 = arith.constant 0 : i32
    %c0_i32_0 = arith.constant 0 : i32
    return %arg0, %c0_i32 : i32, i32
  }
}

module attributes {stable_mosaic.version = 11 : i64} {
  func.func @_deform_matmul_kernel(%arg0: i32, %arg1: memref<256x144xf32, #tpu.memory_space<vmem>>, %arg2: memref<144x16xf32, #tpu.memory_space<vmem>>, %arg3: memref<1x16xf32, #tpu.memory_space<vmem>>, %arg4: memref<256x16xf32, #tpu.memory_space<vmem>>) attributes {dimension_semantics = [#tpu.dimension_semantics<parallel>], iteration_bounds = array<i64: 2>, scalar_prefetch = 0 : i64, scratch_operands = 0 : i64, tpu.core_type = #tpu.core_type<tc>, window_params = [{transform_indices = @transform_0, window_bounds = array<i64: 256, 144>}, {pipeline_mode = #tpu.pipeline_mode<synchronous>, transform_indices = @transform_1, window_bounds = array<i64: 144, 16>}, {pipeline_mode = #tpu.pipeline_mode<synchronous>, transform_indices = @transform_2, window_bounds = array<i64: 1, 16>}, {transform_indices = @transform_3, window_bounds = array<i64: 256, 16>}]} {
    %c0 = arith.constant 0 : index
    %c0_0 = arith.constant 0 : index
    %0 = vector.load %arg1[%c0, %c0_0] : memref<256x144xf32, #tpu.memory_space<vmem>>, vector<256x144xf32>
    %c0_1 = arith.constant 0 : index
    %c0_2 = arith.constant 0 : index
    %1 = vector.load %arg2[%c0_1, %c0_2] : memref<144x16xf32, #tpu.memory_space<vmem>>, vector<144x16xf32>
    %cst = arith.constant dense<0.000000e+00> : vector<256x16xf32>
    %2 = tpu.matmul %0, %1, %cst {dimension_numbers = #tpu.dot_dimension_numbers<[1], [0], [0], [1], [0, 0, 1, 1], [], []>} : vector<256x144xf32>, vector<144x16xf32>, vector<256x16xf32> -> vector<256x16xf32>
    %c0_3 = arith.constant 0 : index
    %c0_4 = arith.constant 0 : index
    %3 = vector.load %arg3[%c0_3, %c0_4] : memref<1x16xf32, #tpu.memory_space<vmem>>, vector<1x16xf32>
    %4 = vector.broadcast %3 : vector<1x16xf32> to vector<256x16xf32>
    %5 = arith.addf %2, %4 : vector<256x16xf32>
    %c0_5 = arith.constant 0 : index
    %c0_6 = arith.constant 0 : index
    %6 = vector.load %arg4[%c0_5, %c0_6] : memref<256x16xf32, #tpu.memory_space<vmem>>, vector<256x16xf32>
    tpu.vector_store %arg4[%c0_5, %c0_6], %5 {strides = array<i32>} : memref<256x16xf32, #tpu.memory_space<vmem>>, vector<256x16xf32>,
    return
  }
  func.func @transform_0(%arg0: i32) -> (i32, i32) {
    %c0_i32 = arith.constant 0 : i32
    %c0_i32_0 = arith.constant 0 : i32
    return %arg0, %c0_i32 : i32, i32
  }
  func.func @transform_1(%arg0: i32) -> (i32, i32) {
    %c0_i32 = arith.constant 0 : i32
    %c0_i32_0 = arith.constant 0 : i32
    %c0_i32_1 = arith.constant 0 : i32
    return %c0_i32, %c0_i32_0 : i32, i32
  }
  func.func @transform_2(%arg0: i32) -> (i32, i32) {
    %c0_i32 = arith.constant 0 : i32
    %c0_i32_0 = arith.constant 0 : i32
    %c0_i32_1 = arith.constant 0 : i32
    return %c0_i32, %c0_i32_0 : i32, i32
  }
  func.func @transform_3(%arg0: i32) -> (i32, i32) {
    %c0_i32 = arith.constant 0 : i32
    %c0_i32_0 = arith.constant 0 : i32
    return %arg0, %c0_i32 : i32, i32
  }
}

</mosaic_0001>

<llo_original>
// kernel: deform_conv_forward.2
$region0: #{deform_conv_forward.2}
  #allocation0 [shape = 'u32[]', space=smem, size = 0x4, offset = 0x4, fixed_abs, tag = 'smem constant byte address 0x4 - core index']
  #allocation1 [shape = 'u32[144,128]{1,0:T(1,128)}', space=vmem, size = 0x12000, scoped, tag = 'internal scratch']
  #allocation2 [shape = 'f32[1]{0:T(128)S(6)}', space=smem, size = 0x200, scoped, tag = 'scoped memory for deform_conv_forward.2']
  %s0 = inlined_call_operand.vmem [shape: f32[512,144], index: 0, kind: input, shape index: {}]
  %s1 = inlined_call_operand.vmem [shape: f32[144,18], index: 1, kind: input, shape index: {}]
  %s2 = inlined_call_operand.vmem [shape: f32[1,18], index: 2, kind: input, shape index: {}]
  %s3 = inlined_call_operand.<no memory space> [shape: f32[1], index: 3, kind: input, shape index: {}]
  %s4 = inlined_call_operand.vmem [shape: f32[512,18], index: 4, kind: output, shape index: {}]
  %s5 = sld [smem:[#allocation0]]
  $region49: #{deform_conv_forward.2} parent=0
    _
  %s7 = ssub.s32 1, %s5
  %s8 = scalar_select 0, %s7, %s5
  %9 = sst [smem:[#allocation2]] %s3
  loop: start=0, step=1, limit=4
  $region2: #{deform_conv_forward.2} parent=0 // loop_pre_header
    _
  $region3: #{deform_conv_forward.2} parent=0 // loop_header
    %s11 = sphi 0, %s15
    %p12 = scmp.ge.s32.totalorder %s11, 4
    %s21 = sphi 0, %s23
    %s24 = sphi 0, %s21
    %s25 = sphi 0, %s24
    %s41 = sphi 0, %s25
    %s45 = sphi 0, %s45
    %s47 = sphi 0, %s45
    %s48 = sphi 0, %s47
    %s62 = sphi 0, %s48
    %s66 = sphi 0, %s66
    %s68 = sphi 0, %s66
    %s69 = sphi 0, %s68
    %s83 = sphi 0, %s69
    %s87 = sphi 0, %s87
    %s89 = sphi 0, %s87
    %s90 = sphi 0, %s89
    %s104 = sphi 0, %s90
    %s110 = sphi 0, %s112
    %s113 = sphi 0, %s110
    %s114 = sphi 0, %s113
    %s130 = sphi 0, %s114
  $region4: #{deform_conv_forward.2} parent=0 // loop_header_branch
    %14 = sbr.rel (%p12) target = $region8
  $region5: #{deform_conv_forward.2} parent=0 // loop_body
    %s16 = ssub.s32 %s11, 1
    %s17 = ssub.s32 %s11, 2
    %s18 = sadd.s32 %s11, 1
    %s19 = ssub.s32 %s11, %s18
    %p20 = scmp.eq.s32.totalorder %s19, 0
    %s22 = sadd.s32 %s21, 1
    %s23 = scalar_select %p20, %s21, %s22
    %p26 = pneg %p20
    %p27 = scmp.eq.s32.totalorder %s11, 1
    %p28 = por %p26, %p27
    %p29 = scmp.ne.s32.totalorder %s21, %s24
    %p30 = scmp.eq.s32.totalorder %s11, 0
    %p31 = por %p29, %p30
    %p32 = scmp.ne.s32.totalorder %s21, %s24
    %p33 = scmp.eq.s32.totalorder %s16, 1
    %p34 = por %p32, %p33
    %p35 = scmp.ne.s32.totalorder %s24, %s25
    %p36 = scmp.eq.s32.totalorder %s16, 0
    %p37 = por %p35, %p36
    %p38 = scmp.ne.s32.totalorder %s24, %s25
    %p39 = scmp.eq.s32.totalorder %s17, 1
    %p40 = por %p38, %p39
    %p42 = scmp.ne.s32.totalorder %s25, %s41
    %p43 = scmp.eq.s32.totalorder %s17, 0
    %p44 = por %p42, %p43
    %s46 = sadd.s32 %s45, 1
    %p49 = scmp.eq.s32.totalorder %s11, 1
    %p50 = scmp.ne.s32.totalorder %s45, %s47
    %p51 = scmp.eq.s32.totalorder %s11, 0
    %p52 = por %p50, %p51
    %p53 = scmp.ne.s32.totalorder %s45, %s47
    %p54 = scmp.eq.s32.totalorder %s16, 1
    %p55 = por %p53, %p54
    %p56 = scmp.ne.s32.totalorder %s47, %s48
    %p57 = scmp.eq.s32.totalorder %s16, 0
    %p58 = por %p56, %p57
    %p59 = scmp.ne.s32.totalorder %s47, %s48
    %p60 = scmp.eq.s32.totalorder %s17, 1
    %p61 = por %p59, %p60
    %p63 = scmp.ne.s32.totalorder %s48, %s62
    %p64 = scmp.eq.s32.totalorder %s17, 0
    %p65 = por %p63, %p64
    %s67 = sadd.s32 %s66, 1
    %p70 = scmp.eq.s32.totalorder %s11, 1
    %p71 = scmp.ne.s32.totalorder %s66, %s68
    %p72 = scmp.eq.s32.totalorder %s11, 0
    %p73 = por %p71, %p72
    %p74 = scmp.ne.s32.totalorder %s66, %s68
    %p75 = scmp.eq.s32.totalorder %s16, 1
    %p76 = por %p74, %p75
    %p77 = scmp.ne.s32.totalorder %s68, %s69
    %p78 = scmp.eq.s32.totalorder %s16, 0
    %p79 = por %p77, %p78
    %p80 = scmp.ne.s32.totalorder %s68, %s69
    %p81 = scmp.eq.s32.totalorder %s17, 1
    %p82 = por %p80, %p81
    %p84 = scmp.ne.s32.totalorder %s69, %s83
    %p85 = scmp.eq.s32.totalorder %s17, 0
    %p86 = por %p84, %p85
    %s88 = sadd.s32 %s87, 1
    %p91 = scmp.eq.s32.totalorder %s11, 1
    %p92 = scmp.ne.s32.totalorder %s87, %s89
    %p93 = scmp.eq.s32.totalorder %s11, 0
    %p94 = por %p92, %p93
    %p95 = scmp.ne.s32.totalorder %s87, %s89
    %p96 = scmp.eq.s32.totalorder %s16, 1
    %p97 = por %p95, %p96
    %p98 = scmp.ne.s32.totalorder %s89, %s90
    %p99 = scmp.eq.s32.totalorder %s16, 0
    %p100 = por %p98, %p99
    %p101 = scmp.ne.s32.totalorder %s89, %s90
    %p102 = scmp.eq.s32.totalorder %s17, 1
    %p103 = por %p101, %p102
    %p105 = scmp.ne.s32.totalorder %s90, %s104
    %p106 = scmp.eq.s32.totalorder %s17, 0
    %p107 = por %p105, %p106
    %s108 = ssub.s32 %s11, %s18
    %p109 = scmp.eq.s32.totalorder %s108, 0
    %s111 = sadd.s32 %s110, 1
    %s112 = scalar_select %p109, %s110, %s111
    %p115 = pneg %p109
    %p116 = scmp.eq.s32.totalorder %s11, 1
    %p117 = por %p115, %p116
    %p118 = scmp.ne.s32.totalorder %s110, %s113
    %p119 = scmp.eq.s32.totalorder %s11, 0
    %p120 = por %p118, %p119
    %p121 = scmp.ne.s32.totalorder %s110, %s113
    %p122 = scmp.eq.s32.totalorder %s16, 1
    %p123 = por %p121, %p122
    %p124 = scmp.ne.s32.totalorder %s113, %s114
    %p125 = scmp.eq.s32.totalorder %s16, 0
    %p126 = por %p124, %p125
    %p127 = scmp.ne.s32.totalorder %s113, %s114
    %p128 = scmp.eq.s32.totalorder %s17, 1
    %p129 = por %p127, %p128
    %p131 = scmp.ne.s32.totalorder %s114, %s130
    %p132 = scmp.eq.s32.totalorder %s17, 0
    %p133 = por %p131, %p132
    %p134 = scmp.le.s32.totalorder 1, %s11
    %p135 = scmp.lt.s32.totalorder %s11, 3
    %p136 = pnand %p134, %p135
    %p137 = pneg %p136
    // Predicated region
    $region9: #{deform_conv_forward.2} parent=5 // pred_check
      _
    $region10: #{deform_conv_forward.2} parent=5 // pred_check_branch
      %139 = sbr.rel (%p136) target = $region12
    $region11: #{deform_conv_forward.2} parent=5 // pred_region
      %s140 = ssub.s32 %s11, 1
      // Predicated region
      $region13: #{deform_conv_forward.2} parent=11 // pred_check
        %p141 = pneg %p58
      $region14: #{deform_conv_forward.2} parent=11 // pred_check_branch
        %143 = sbr.rel (%p141) target = $region16
      $region15: #{deform_conv_forward.2} parent=11 // pred_region
        _
      $region16: #{deform_conv_forward.2} parent=11 // pred_fallthru
        _
      // Predicated region
      $region17: #{deform_conv_forward.2} parent=11 // pred_check
        %p144 = pneg %p79
      $region18: #{deform_conv_forward.2} parent=11 // pred_check_branch
        %146 = sbr.rel (%p144) target = $region20
      $region19: #{deform_conv_forward.2} parent=11 // pred_region
        _
      $region20: #{deform_conv_forward.2} parent=11 // pred_fallthru
        _
      // Predicated region
      $region21: #{deform_conv_forward.2} parent=11 // pred_check
        %p147 = pneg %p100
      $region22: #{deform_conv_forward.2} parent=11 // pred_check_branch
        %149 = sbr.rel (%p147) target = $region24
      $region23: #{deform_conv_forward.2} parent=11 // pred_region
        _
      $region24: #{deform_conv_forward.2} parent=11 // pred_fallthru
        _
    $region12: #{deform_conv_forward.2} parent=5 // pred_fallthru
      _
    %p150 = scmp.lt.s32.totalorder %s11, 2
    // Predicated region
    $region25: #{deform_conv_forward.2} parent=5 // pred_check
      %p151 = pneg %p150
    $region26: #{deform_conv_forward.2} parent=5 // pred_check_branch
      %153 = sbr.rel (%p151) target = $region28
    $region27: #{deform_conv_forward.2} parent=5 // pred_region
      // Predicated region
      $region29: #{deform_conv_forward.2} parent=27 // pred_check
        %p154 = pneg %p31
      $region30: #{deform_conv_forward.2} parent=27 // pred_check_branch
        %156 = sbr.rel (%p154) target = $region32
      $region31: #{deform_conv_forward.2} parent=27 // pred_region
        %s157 = smul.u32 32, %s11
        %p158 = scmp.lt.s32.totalorder %s157, 63
        %s159 = scalar_select %p158, %s157, 63
        %s160 = smul.addr %s159, 2
        %s161 = smul.addr %s160, 8
        %s162 = scalar_lea.vmem %s0, %s161
        %s163 = smul.u32 32, %s11
      $region32: #{deform_conv_forward.2} parent=27 // pred_fallthru
        _
    $region28: #{deform_conv_forward.2} parent=5 // pred_fallthru
      _
    %p164 = scmp.le.s32.totalorder 1, %s11
    %p165 = scmp.lt.s32.totalorder %s11, 3
    %p166 = pnand %p164, %p165
    %p167 = pneg %p166
    // Predicated region
    $region33: #{deform_conv_forward.2} parent=5 // pred_check
      _
    $region34: #{deform_conv_forward.2} parent=5 // pred_check_branch
      %169 = sbr.rel (%p166) target = $region36
    $region35: #{deform_conv_forward.2} parent=5 // pred_region
      %s170 = ssub.s32 %s11, 1
      %s171 = smul.u32 32, %s16
      %p172 = scmp.lt.s32.totalorder %s171, 63
      %s173 = scalar_select %p172, %s171, 63
      %s174 = smul.addr %s173, 2
      %s175 = smul.addr %s174, 8
      %s176 = scalar_lea.vmem %s0, %s175
      %p177 = pneg %p37
      %p178 = pneg %p34
      %p179 = pneg %p58
      %p180 = pneg %p55
      %p181 = pneg %p79
      %p182 = pneg %p76
      %p183 = pneg %p100
      %p184 = pneg %p97
      %p185 = pneg %p126
      %p186 = pneg %p123
      %s187 = smul.u32 32, %s16
      %p188 = scmp.lt.s32.totalorder %s187, 63
      %s189 = scalar_select %p188, %s187, 63
      %s190 = smul.addr %s189, 8
      %s191 = scalar_lea.vmem %s4, %s190
      %s192 = smul.u32 32, %s16
      %p193 = scmp.lt.s32.totalorder %s192, 63
      %s194 = scalar_select %p193, %s192, 63
      %s195 = smul.addr %s194, 2
      %s196 = smul.addr %s195, 8
      %s197 = scalar_lea.vmem %s0, %s196
      %s198 = smul.u32 32, %s16
      %s199 = smul.u32 32, %s16
      %p200 = scmp.lt.s32.totalorder %s199, 63
      %s201 = scalar_select %p200, %s199, 63
      %s202 = smul.addr %s201, 8
      %s203 = scalar_lea.vmem %s4, %s202
      %s204 = smul.u32 32, %s16
      %v205 = vld [vmem:[%s197] sm:$0xff]
      %v206 = vld [vmem:[%s197 + $0x8] sm:$0xff]
      %v207 = vld [vmem:[%s197 + $0x10] sm:$0xff]
      %v208 = vld [vmem:[%s197 + $0x18] sm:$0xff]
      %v209 = vld [vmem:[%s197 + $0x20] sm:$0xff]
      %v210 = vld [vmem:[%s197 + $0x28] sm:$0xff]
      %v211 = vld [vmem:[%s197 + $0x30] sm:$0xff]
      %v212 = vld [vmem:[%s197 + $0x38] sm:$0xff]
      %v213 = vld [vmem:[%s197 + $0x40] sm:$0xff]
      %v214 = vld [vmem:[%s197 + $0x48] sm:$0xff]
      %v215 = vld [vmem:[%s197 + $0x50] sm:$0xff]
      %v216 = vld [vmem:[%s197 + $0x58] sm:$0xff]
      %v217 = vld [vmem:[%s197 + $0x60] sm:$0xff]
      %v218 = vld [vmem:[%s197 + $0x68] sm:$0xff]
      %v219 = vld [vmem:[%s197 + $0x70] sm:$0xff]
      %v220 = vld [vmem:[%s197 + $0x78] sm:$0xff]
      %v221 = vld [vmem:[%s197 + $0x80] sm:$0xff]
      %v222 = vld [vmem:[%s197 + $0x88] sm:$0xff]
      %v223 = vld [vmem:[%s197 + $0x90] sm:$0xff]
      %v224 = vld [vmem:[%s197 + $0x98] sm:$0xff]
      %v225 = vld [vmem:[%s197 + $0xa0] sm:$0xff]
      %v226 = vld [vmem:[%s197 + $0xa8] sm:$0xff]
      %v227 = vld [vmem:[%s197 + $0xb0] sm:$0xff]
      %v228 = vld [vmem:[%s197 + $0xb8] sm:$0xff]
      %v229 = vld [vmem:[%s197 + $0xc0] sm:$0xff]
      %v230 = vld [vmem:[%s197 + $0xc8] sm:$0xff]
      %v231 = vld [vmem:[%s197 + $0xd0] sm:$0xff]
      %v232 = vld [vmem:[%s197 + $0xd8] sm:$0xff]
      %v233 = vld [vmem:[%s197 + $0xe0] sm:$0xff]
      %v234 = vld [vmem:[%s197 + $0xe8] sm:$0xff]
      %v235 = vld [vmem:[%s197 + $0xf0] sm:$0xff]
      %v236 = vld [vmem:[%s197 + $0xf8] sm:$0xff]
      %v237 = vld [vmem:[%s197 + $0x100] sm:$0xff]
      %v238 = vld [vmem:[%s197 + $0x108] sm:$0xff]
      %v239 = vld [vmem:[%s197 + $0x110] sm:$0xff]
      %v240 = vld [vmem:[%s197 + $0x118] sm:$0xff]
      %v241 = vld [vmem:[%s197 + $0x120] sm:$0xff]
      %v242 = vld [vmem:[%s197 + $0x128] sm:$0xff]
      %v243 = vld [vmem:[%s197 + $0x130] sm:$0xff]
      %v244 = vld [vmem:[%s197 + $0x138] sm:$0xff]
      %v245 = vld [vmem:[%s197 + $0x140] sm:$0xff]
      %v246 = vld [vmem:[%s197 + $0x148] sm:$0xff]
      %v247 = vld [vmem:[%s197 + $0x150] sm:$0xff]
      %v248 = vld [vmem:[%s197 + $0x158] sm:$0xff]
      %v249 = vld [vmem:[%s197 + $0x160] sm:$0xff]
      %v250 = vld [vmem:[%s197 + $0x168] sm:$0xff]
      %v251 = vld [vmem:[%s197 + $0x170] sm:$0xff]
      %v252 = vld [vmem:[%s197 + $0x178] sm:$0xff]
      %v253 = vld [vmem:[%s197 + $0x180] sm:$0xff]
      %v254 = vld [vmem:[%s197 + $0x188] sm:$0xff]
      %v255 = vld [vmem:[%s197 + $0x190] sm:$0xff]
      %v256 = vld [vmem:[%s197 + $0x198] sm:$0xff]
      %v257 = vld [vmem:[%s197 + $0x1a0] sm:$0xff]
      %v258 = vld [vmem:[%s197 + $0x1a8] sm:$0xff]
      %v259 = vld [vmem:[%s197 + $0x1b0] sm:$0xff]
      %v260 = vld [vmem:[%s197 + $0x1b8] sm:$0xff]
      %v261 = vld [vmem:[%s197 + $0x1c0] sm:$0xff]
      %v262 = vld [vmem:[%s197 + $0x1c8] sm:$0xff]
      %v263 = vld [vmem:[%s197 + $0x1d0] sm:$0xff]
      %v264 = vld [vmem:[%s197 + $0x1d8] sm:$0xff]
      %v265 = vld [vmem:[%s197 + $0x1e0] sm:$0xff]
      %v266 = vld [vmem:[%s197 + $0x1e8] sm:$0xff]
      %v267 = vld [vmem:[%s197 + $0x1f0] sm:$0xff]
      %v268 = vld [vmem:[%s197 + $0x1f8] sm:$0xff]
      %v269 = vld [vmem:[%s1] sm:$0xff]
      %v270 = vld [vmem:[%s1 + $0x8] sm:$0xff]
      %v271 = vld [vmem:[%s1 + $0x10] sm:$0xff]
      %v272 = vld [vmem:[%s1 + $0x18] sm:$0xff]
      %v273 = vld [vmem:[%s1 + $0x20] sm:$0xff]
      %v274 = vld [vmem:[%s1 + $0x28] sm:$0xff]
      %v275 = vld [vmem:[%s1 + $0x30] sm:$0xff]
      %v276 = vld [vmem:[%s1 + $0x38] sm:$0xff]
      %v277 = vld [vmem:[%s1 + $0x40] sm:$0xff]
      %v278 = vld [vmem:[%s1 + $0x48] sm:$0xff]
      %v279 = vld [vmem:[%s1 + $0x50] sm:$0xff]
      %v280 = vld [vmem:[%s1 + $0x58] sm:$0xff]
      %v281 = vld [vmem:[%s1 + $0x60] sm:$0xff]
      %v282 = vld [vmem:[%s1 + $0x68] sm:$0xff]
      %v283 = vld [vmem:[%s1 + $0x70] sm:$0xff]
      %v284 = vld [vmem:[%s1 + $0x78] sm:$0xff]
      %v285 = vld [vmem:[%s1 + $0x80] sm:$0xff]
      %v286 = vld [vmem:[%s1 + $0x88] sm:$0xff]
      %v287 = vld [vmem:[%s2] sm:$0x1]
      %v289 = vlaneseq
      %v290 = vshrl.u32 %v289, 7
      %v291 = vsub.s32 0, %v290
      %v292 = vrot.slane %v287, %v291
      %vm294 = vcmask 130048
      %v296 = vsel %vm294, %v206, 0
      %v299 = vsel %vm294, %v208, 0
      %v302 = vsel %vm294, %v210, 0
      %v305 = vsel %vm294, %v212, 0
      %v308 = vsel %vm294, %v214, 0
      %v311 = vsel %vm294, %v216, 0
      %v314 = vsel %vm294, %v218, 0
      %v317 = vsel %vm294, %v220, 0
      %v320 = vsel %vm294, %v222, 0
      %v323 = vsel %vm294, %v224, 0
      %v326 = vsel %vm294, %v226, 0
      %v329 = vsel %vm294, %v228, 0
      %v332 = vsel %vm294, %v230, 0
      %v335 = vsel %vm294, %v232, 0
      %v338 = vsel %vm294, %v234, 0
      %v341 = vsel %vm294, %v236, 0
      %v344 = vsel %vm294, %v238, 0
      %v347 = vsel %vm294, %v240, 0
      %v350 = vsel %vm294, %v242, 0
      %v353 = vsel %vm294, %v244, 0
      %v356 = vsel %vm294, %v246, 0
      %v359 = vsel %vm294, %v248, 0
      %v362 = vsel %vm294, %v250, 0
      %v365 = vsel %vm294, %v252, 0
      %v368 = vsel %vm294, %v254, 0
      %v371 = vsel %vm294, %v256, 0
      %v374 = vsel %vm294, %v258, 0
      %v377 = vsel %vm294, %v260, 0
      %v380 = vsel %vm294, %v262, 0
      %v383 = vsel %vm294, %v264, 0
      %v386 = vsel %vm294, %v266, 0
      %v389 = vsel %vm294, %v268, 0
      %391 = vmatprep.subr.mxu0 0.0
      %392 = vmatpush1.msra.mxu0 %v269
      %393 = vmatprep.subr.mxu0 0.0
      %394 = vmatpush1.msra.mxu0 %v270
      %395 = vmatprep.subr.mxu0 0.0
      %396 = vmatpush1.msra.mxu0 %v271
      %397 = vmatprep.subr.mxu0 0.0
      %398 = vmatpush1.msra.mxu0 %v272
      %399 = vmatprep.subr.mxu0 0.0
      %400 = vmatpush1.msra.mxu0 %v273
      %401 = vmatprep.subr.mxu0 0.0
      %402 = vmatpush1.msra.mxu0 %v274
      %403 = vmatprep.subr.mxu0 0.0
      %404 = vmatpush1.msra.mxu0 %v275
      %405 = vmatprep.subr.mxu0 0.0
      %406 = vmatpush1.msra.mxu0 %v276
      %407 = vmatprep.subr.mxu0 0.0
      %408 = vmatpush1.msra.mxu0 %v277
      %409 = vmatprep.subr.mxu0 0.0
      %410 = vmatpush1.msra.mxu0 %v278
      %411 = vmatprep.subr.mxu0 0.0
      %412 = vmatpush1.msra.mxu0 %v279
      %413 = vmatprep.subr.mxu0 0.0
      %414 = vmatpush1.msra.mxu0 %v280
      %415 = vmatprep.subr.mxu0 0.0
      %416 = vmatpush1.msra.mxu0 %v281
      %417 = vmatprep.subr.mxu0 0.0
      %418 = vmatpush1.msra.mxu0 %v282
      %419 = vmatprep.subr.mxu0 0.0
      %420 = vmatpush1.msra.mxu0 %v283
      %421 = vmatprep.subr.mxu0 0.0
      %422 = vmatpush1.msra.mxu0 %v284
      %423 = vmatprep.subr.mxu0 0.0
      %424 = vmatpush1.msra.mxu0 %v285
      %425 = vmatprep.subr.mxu0 0.0
      %426 = vmatpush1.msra.mxu0 %v286
      %427 = vmatprep.subr.mxu0 0.0
      %428 = vmatpush1.msra.mxu0 0.0
      %429 = vmatprep.subr.mxu0 0.0
      %430 = vmatpush1.msra.mxu0 0.0
      %431 = vmatprep.subr.mxu0 0.0
      %432 = vmatpush1.msra.mxu0 0.0
      %433 = vmatprep.subr.mxu0 0.0
      %434 = vmatpush1.msra.mxu0 0.0
      %435 = vmatprep.subr.mxu0 0.0
      %436 = vmatpush1.msra.mxu0 0.0
      %437 = vmatprep.subr.mxu0 0.0
      %438 = vmatpush1.msra.mxu0 0.0
      %439 = vmatprep.subr.mxu0 0.0
      %440 = vmatpush1.msra.mxu0 0.0
      %441 = vmatprep.subr.mxu0 0.0
      %442 = vmatpush1.msra.mxu0 0.0
      %443 = vmatprep.subr.mxu0 0.0
      %444 = vmatpush1.msra.mxu0 0.0
      %445 = vmatprep.subr.mxu0 0.0
      %446 = vmatpush1.msra.mxu0 0.0
      %447 = vmatprep.subr.mxu0 0.0
      %448 = vmatpush1.msra.mxu0 0.0
      %449 = vmatprep.subr.mxu0 0.0
      %450 = vmatpush1.msra.mxu0 0.0
      %451 = vmatprep.subr.mxu0 0.0
      %452 = vmatpush1.msra.mxu0 0.0
      %453 = vmatprep.subr.mxu0 0.0
      %454 = vmatpush1.msra.mxu0 0.0
      %455 = vmatprep.mubr.f32.mxu0 %v296
      %456 = vmatmul.mubr.f32.gmra.mrb[0].mxu0 %v205
      %v457 = vpop.f32.mrb[0].mxu0
      %v458 = vadd.f32 %v292, %v457
      %v459 = vpop.f32.mrb[0].mxu0
      %460 = vmatprep.mubr.f32.mxu0 %v299
      %461 = vmatmul.mubr.f32.gmra.mrb[0].mxu0 %v207
      %v462 = vpop.f32.mrb[0].mxu0
      %v463 = vadd.f32 %v292, %v462
      %v464 = vpop.f32.mrb[0].mxu0
      %465 = vmatprep.mubr.f32.mxu0 %v302
      %466 = vmatmul.mubr.f32.gmra.mrb[0].mxu0 %v209
      %v467 = vpop.f32.mrb[0].mxu0
      %v468 = vadd.f32 %v292, %v467
      %v469 = vpop.f32.mrb[0].mxu0
      %470 = vmatprep.mubr.f32.mxu0 %v305
      %471 = vmatmul.mubr.f32.gmra.mrb[0].mxu0 %v211
      %v472 = vpop.f32.mrb[0].mxu0
      %v473 = vadd.f32 %v292, %v472
      %v474 = vpop.f32.mrb[0].mxu0
      %475 = vmatprep.mubr.f32.mxu0 %v308
      %476 = vmatmul.mubr.f32.gmra.mrb[0].mxu0 %v213
      %v477 = vpop.f32.mrb[0].mxu0
      %v478 = vadd.f32 %v292, %v477
      %v479 = vpop.f32.mrb[0].mxu0
      %480 = vmatprep.mubr.f32.mxu0 %v311
      %481 = vmatmul.mubr.f32.gmra.mrb[0].mxu0 %v215
      %v482 = vpop.f32.mrb[0].mxu0
      %v483 = vadd.f32 %v292, %v482
      %v484 = vpop.f32.mrb[0].mxu0
      %485 = vmatprep.mubr.f32.mxu0 %v314
      %486 = vmatmul.mubr.f32.gmra.mrb[0].mxu0 %v217
      %v487 = vpop.f32.mrb[0].mxu0
      %v488 = vadd.f32 %v292, %v487
      %v489 = vpop.f32.mrb[0].mxu0
      %490 = vmatprep.mubr.f32.mxu0 %v317
      %491 = vmatmul.mubr.f32.gmra.mrb[0].mxu0 %v219
      %v492 = vpop.f32.mrb[0].mxu0
      %v493 = vadd.f32 %v292, %v492
      %v494 = vpop.f32.mrb[0].mxu0
      %495 = vmatprep.mubr.f32.mxu0 %v320
      %496 = vmatmul.mubr.f32.gmra.mrb[0].mxu0 %v221
      %v497 = vpop.f32.mrb[0].mxu0
      %v498 = vadd.f32 %v292, %v497
      %v499 = vpop.f32.mrb[0].mxu0
      %500 = vmatprep.mubr.f32.mxu0 %v323
      %501 = vmatmul.mubr.f32.gmra.mrb[0].mxu0 %v223
      %v502 = vpop.f32.mrb[0].mxu0
      %v503 = vadd.f32 %v292, %v502
      %v504 = vpop.f32.mrb[0].mxu0
      %505 = vmatprep.mubr.f32.mxu0 %v326
      %506 = vmatmul.mubr.f32.gmra.mrb[0].mxu0 %v225
      %v507 = vpop.f32.mrb[0].mxu0
      %v508 = vadd.f32 %v292, %v507
      %v509 = vpop.f32.mrb[0].mxu0
      %510 = vmatprep.mubr.f32.mxu0 %v329
      %511 = vmatmul.mubr.f32.gmra.mrb[0].mxu0 %v227
      %v512 = vpop.f32.mrb[0].mxu0
      %v513 = vadd.f32 %v292, %v512
      %v514 = vpop.f32.mrb[0].mxu0
      %515 = vmatprep.mubr.f32.mxu0 %v332
      %516 = vmatmul.mubr.f32.gmra.mrb[0].mxu0 %v229
      %v517 = vpop.f32.mrb[0].mxu0
      %v518 = vadd.f32 %v292, %v517
      %v519 = vpop.f32.mrb[0].mxu0
      %520 = vmatprep.mubr.f32.mxu0 %v335
      %521 = vmatmul.mubr.f32.gmra.mrb[0].mxu0 %v231
      %v522 = vpop.f32.mrb[0].mxu0
      %v523 = vadd.f32 %v292, %v522
      %v524 = vpop.f32.mrb[0].mxu0
      %525 = vmatprep.mubr.f32.mxu0 %v338
      %526 = vmatmul.mubr.f32.gmra.mrb[0].mxu0 %v233
      %v527 = vpop.f32.mrb[0].mxu0
      %v528 = vadd.f32 %v292, %v527
      %v529 = vpop.f32.mrb[0].mxu0
      %530 = vmatprep.mubr.f32.mxu0 %v341
      %531 = vmatmul.mubr.f32.gmra.mrb[0].mxu0 %v235
      %v532 = vpop.f32.mrb[0].mxu0
      %v533 = vadd.f32 %v292, %v532
      %v534 = vpop.f32.mrb[0].mxu0
      %535 = vmatprep.mubr.f32.mxu0 %v344
      %536 = vmatmul.mubr.f32.gmra.mrb[0].mxu0 %v237
      %v537 = vpop.f32.mrb[0].mxu0
      %v538 = vadd.f32 %v292, %v537
      %v539 = vpop.f32.mrb[0].mxu0
      %540 = vmatprep.mubr.f32.mxu0 %v347
      %541 = vmatmul.mubr.f32.gmra.mrb[0].mxu0 %v239
      %v542 = vpop.f32.mrb[0].mxu0
      %v543 = vadd.f32 %v292, %v542
      %v544 = vpop.f32.mrb[0].mxu0
      %545 = vmatprep.mubr.f32.mxu0 %v350
      %546 = vmatmul.mubr.f32.gmra.mrb[0].mxu0 %v241
      %v547 = vpop.f32.mrb[0].mxu0
      %v548 = vadd.f32 %v292, %v547
      %v549 = vpop.f32.mrb[0].mxu0
      %550 = vmatprep.mubr.f32.mxu0 %v353
      %551 = vmatmul.mubr.f32.gmra.mrb[0].mxu0 %v243
      %v552 = vpop.f32.mrb[0].mxu0
      %v553 = vadd.f32 %v292, %v552
      %v554 = vpop.f32.mrb[0].mxu0
      %555 = vmatprep.mubr.f32.mxu0 %v356
      %556 = vmatmul.mubr.f32.gmra.mrb[0].mxu0 %v245
      %v557 = vpop.f32.mrb[0].mxu0
      %v558 = vadd.f32 %v292, %v557
      %v559 = vpop.f32.mrb[0].mxu0
      %560 = vmatprep.mubr.f32.mxu0 %v359
      %561 = vmatmul.mubr.f32.gmra.mrb[0].mxu0 %v247
      %v562 = vpop.f32.mrb[0].mxu0
      %v563 = vadd.f32 %v292, %v562
      %v564 = vpop.f32.mrb[0].mxu0
      %565 = vmatprep.mubr.f32.mxu0 %v362
      %566 = vmatmul.mubr.f32.gmra.mrb[0].mxu0 %v249
      %v567 = vpop.f32.mrb[0].mxu0
      %v568 = vadd.f32 %v292, %v567
      %v569 = vpop.f32.mrb[0].mxu0
      %570 = vmatprep.mubr.f32.mxu0 %v365
      %571 = vmatmul.mubr.f32.gmra.mrb[0].mxu0 %v251
      %v572 = vpop.f32.mrb[0].mxu0
      %v573 = vadd.f32 %v292, %v572
      %v574 = vpop.f32.mrb[0].mxu0
      %575 = vmatprep.mubr.f32.mxu0 %v368
      %576 = vmatmul.mubr.f32.gmra.mrb[0].mxu0 %v253
      %v577 = vpop.f32.mrb[0].mxu0
      %v578 = vadd.f32 %v292, %v577
      %v579 = vpop.f32.mrb[0].mxu0
      %580 = vmatprep.mubr.f32.mxu0 %v371
      %581 = vmatmul.mubr.f32.gmra.mrb[0].mxu0 %v255
      %v582 = vpop.f32.mrb[0].mxu0
      %v583 = vadd.f32 %v292, %v582
      %v584 = vpop.f32.mrb[0].mxu0
      %585 = vmatprep.mubr.f32.mxu0 %v374
      %586 = vmatmul.mubr.f32.gmra.mrb[0].mxu0 %v257
      %v587 = vpop.f32.mrb[0].mxu0
      %v588 = vadd.f32 %v292, %v587
      %v589 = vpop.f32.mrb[0].mxu0
      %590 = vmatprep.mubr.f32.mxu0 %v377
      %591 = vmatmul.mubr.f32.gmra.mrb[0].mxu0 %v259
      %v592 = vpop.f32.mrb[0].mxu0
      %v593 = vadd.f32 %v292, %v592
      %v594 = vpop.f32.mrb[0].mxu0
      %595 = vmatprep.mubr.f32.mxu0 %v380
      %596 = vmatmul.mubr.f32.gmra.mrb[0].mxu0 %v261
      %v597 = vpop.f32.mrb[0].mxu0
      %v598 = vadd.f32 %v292, %v597
      %v599 = vpop.f32.mrb[0].mxu0
      %600 = vmatprep.mubr.f32.mxu0 %v383
      %601 = vmatmul.mubr.f32.gmra.mrb[0].mxu0 %v263
      %v602 = vpop.f32.mrb[0].mxu0
      %v603 = vadd.f32 %v292, %v602
      %v604 = vpop.f32.mrb[0].mxu0
      %605 = vmatprep.mubr.f32.mxu0 %v386
      %606 = vmatmul.mubr.f32.gmra.mrb[0].mxu0 %v265
      %v607 = vpop.f32.mrb[0].mxu0
      %v608 = vadd.f32 %v292, %v607
      %v609 = vpop.f32.mrb[0].mxu0
      %610 = vmatprep.mubr.f32.mxu0 %v389
      %611 = vmatmul.mubr.f32.gmra.mrb[0].mxu0 %v267
      %v612 = vpop.f32.mrb[0].mxu0
      %v613 = vadd.f32 %v292, %v612
      %v614 = vpop.f32.mrb[0].mxu0
      %615 = vdwg.mxu0
      %s616 = sld [smem:[#allocation2]]
      %vm617 = vcmp.gt.f32.partialorder %v458, 0.0
      %vm618 = vcmp.gt.f32.partialorder %v463, 0.0
      %vm619 = vcmp.gt.f32.partialorder %v468, 0.0
      %vm620 = vcmp.gt.f32.partialorder %v473, 0.0
      %vm621 = vcmp.gt.f32.partialorder %v478, 0.0
      %vm622 = vcmp.gt.f32.partialorder %v483, 0.0
      %vm623 = vcmp.gt.f32.partialorder %v488, 0.0
      %vm624 = vcmp.gt.f32.partialorder %v493, 0.0
      %vm625 = vcmp.gt.f32.partialorder %v498, 0.0
      %vm626 = vcmp.gt.f32.partialorder %v503, 0.0
      %vm627 = vcmp.gt.f32.partialorder %v508, 0.0
      %vm628 = vcmp.gt.f32.partialorder %v513, 0.0
      %vm629 = vcmp.gt.f32.partialorder %v518, 0.0
      %vm630 = vcmp.gt.f32.partialorder %v523, 0.0
      %vm631 = vcmp.gt.f32.partialorder %v528, 0.0
      %vm632 = vcmp.gt.f32.partialorder %v533, 0.0
      %vm633 = vcmp.gt.f32.partialorder %v538, 0.0
      %vm634 = vcmp.gt.f32.partialorder %v543, 0.0
      %vm635 = vcmp.gt.f32.partialorder %v548, 0.0
      %vm636 = vcmp.gt.f32.partialorder %v553, 0.0
      %vm637 = vcmp.gt.f32.partialorder %v558, 0.0
      %vm638 = vcmp.gt.f32.partialorder %v563, 0.0
      %vm639 = vcmp.gt.f32.partialorder %v568, 0.0
      %vm640 = vcmp.gt.f32.partialorder %v573, 0.0
      %vm641 = vcmp.gt.f32.partialorder %v578, 0.0
      %vm642 = vcmp.gt.f32.partialorder %v583, 0.0
      %vm643 = vcmp.gt.f32.partialorder %v588, 0.0
      %vm644 = vcmp.gt.f32.partialorder %v593, 0.0
      %vm645 = vcmp.gt.f32.partialorder %v598, 0.0
      %vm646 = vcmp.gt.f32.partialorder %v603, 0.0
      %vm647 = vcmp.gt.f32.partialorder %v608, 0.0
      %vm648 = vcmp.gt.f32.partialorder %v613, 0.0
      %v649 = vstv %s616
      %v650 = vmul.f32 %v649, %v458
      %v651 = vmul.f32 %v649, %v463
      %v652 = vmul.f32 %v649, %v468
      %v653 = vmul.f32 %v649, %v473
      %v654 = vmul.f32 %v649, %v478
      %v655 = vmul.f32 %v649, %v483
      %v656 = vmul.f32 %v649, %v488
      %v657 = vmul.f32 %v649, %v493
      %v658 = vmul.f32 %v649, %v498
      %v659 = vmul.f32 %v649, %v503
      %v660 = vmul.f32 %v649, %v508
      %v661 = vmul.f32 %v649, %v513
      %v662 = vmul.f32 %v649, %v518
      %v663 = vmul.f32 %v649, %v523
      %v664 = vmul.f32 %v649, %v528
      %v665 = vmul.f32 %v649, %v533
      %v666 = vmul.f32 %v649, %v538
      %v667 = vmul.f32 %v649, %v543
      %v668 = vmul.f32 %v649, %v548
      %v669 = vmul.f32 %v649, %v553
      %v670 = vmul.f32 %v649, %v558
      %v671 = vmul.f32 %v649, %v563
      %v672 = vmul.f32 %v649, %v568
      %v673 = vmul.f32 %v649, %v573
      %v674 = vmul.f32 %v649, %v578
      %v675 = vmul.f32 %v649, %v583
      %v676 = vmul.f32 %v649, %v588
      %v677 = vmul.f32 %v649, %v593
      %v678 = vmul.f32 %v649, %v598
      %v679 = vmul.f32 %v649, %v603
      %v680 = vmul.f32 %v649, %v608
      %v681 = vmul.f32 %v649, %v613
      %v682 = vsel %vm617, %v458, %v650
      %v683 = vsel %vm618, %v463, %v651
      %v684 = vsel %vm619, %v468, %v652
      %v685 = vsel %vm620, %v473, %v653
      %v686 = vsel %vm621, %v478, %v654
      %v687 = vsel %vm622, %v483, %v655
      %v688 = vsel %vm623, %v488, %v656
      %v689 = vsel %vm624, %v493, %v657
      %v690 = vsel %vm625, %v498, %v658
      %v691 = vsel %vm626, %v503, %v659
      %v692 = vsel %vm627, %v508, %v660
      %v693 = vsel %vm628, %v513, %v661
      %v694 = vsel %vm629, %v518, %v662
      %v695 = vsel %vm630, %v523, %v663
      %v696 = vsel %vm631, %v528, %v664
      %v697 = vsel %vm632, %v533, %v665
      %v698 = vsel %vm633, %v538, %v666
      %v699 = vsel %vm634, %v543, %v667
      %v700 = vsel %vm635, %v548, %v668
      %v701 = vsel %vm636, %v553, %v669
      %v702 = vsel %vm637, %v558, %v670
      %v703 = vsel %vm638, %v563, %v671
      %v704 = vsel %vm639, %v568, %v672
      %v705 = vsel %vm640, %v573, %v673
      %v706 = vsel %vm641, %v578, %v674
      %v707 = vsel %vm642, %v583, %v675
      %v708 = vsel %vm643, %v588, %v676
      %v709 = vsel %vm644, %v593, %v677
      %v710 = vsel %vm645, %v598, %v678
      %v711 = vsel %vm646, %v603, %v679
      %v712 = vsel %vm647, %v608, %v680
      %v713 = vsel %vm648, %v613, %v681
      %vm714 = vcmask 146432
      %715 = vst.msk [vmem:[%s203] sm:$0xff] %vm714, %v682
      %716 = vst.msk [vmem:[%s203 + $0x8] sm:$0xff] %vm714, %v683
      %717 = vst.msk [vmem:[%s203 + $0x10] sm:$0xff] %vm714, %v684
      %718 = vst.msk [vmem:[%s203 + $0x18] sm:$0xff] %vm714, %v685
      %719 = vst.msk [vmem:[%s203 + $0x20] sm:$0xff] %vm714, %v686
      %720 = vst.msk [vmem:[%s203 + $0x28] sm:$0xff] %vm714, %v687
      %721 = vst.msk [vmem:[%s203 + $0x30] sm:$0xff] %vm714, %v688
      %722 = vst.msk [vmem:[%s203 + $0x38] sm:$0xff] %vm714, %v689
      %723 = vst.msk [vmem:[%s203 + $0x40] sm:$0xff] %vm714, %v690
      %724 = vst.msk [vmem:[%s203 + $0x48] sm:$0xff] %vm714, %v691
      %725 = vst.msk [vmem:[%s203 + $0x50] sm:$0xff] %vm714, %v692
      %726 = vst.msk [vmem:[%s203 + $0x58] sm:$0xff] %vm714, %v693
      %727 = vst.msk [vmem:[%s203 + $0x60] sm:$0xff] %vm714, %v694
      %728 = vst.msk [vmem:[%s203 + $0x68] sm:$0xff] %vm714, %v695
      %729 = vst.msk [vmem:[%s203 + $0x70] sm:$0xff] %vm714, %v696
      %730 = vst.msk [vmem:[%s203 + $0x78] sm:$0xff] %vm714, %v697
      %731 = vst.msk [vmem:[%s203 + $0x80] sm:$0xff] %vm714, %v698
      %732 = vst.msk [vmem:[%s203 + $0x88] sm:$0xff] %vm714, %v699
      %733 = vst.msk [vmem:[%s203 + $0x90] sm:$0xff] %vm714, %v700
      %734 = vst.msk [vmem:[%s203 + $0x98] sm:$0xff] %vm714, %v701
      %735 = vst.msk [vmem:[%s203 + $0xa0] sm:$0xff] %vm714, %v702
      %736 = vst.msk [vmem:[%s203 + $0xa8] sm:$0xff] %vm714, %v703
      %737 = vst.msk [vmem:[%s203 + $0xb0] sm:$0xff] %vm714, %v704
      %738 = vst.msk [vmem:[%s203 + $0xb8] sm:$0xff] %vm714, %v705
      %739 = vst.msk [vmem:[%s203 + $0xc0] sm:$0xff] %vm714, %v706
      %740 = vst.msk [vmem:[%s203 + $0xc8] sm:$0xff] %vm714, %v707
      %741 = vst.msk [vmem:[%s203 + $0xd0] sm:$0xff] %vm714, %v708
      %742 = vst.msk [vmem:[%s203 + $0xd8] sm:$0xff] %vm714, %v709
      %743 = vst.msk [vmem:[%s203 + $0xe0] sm:$0xff] %vm714, %v710
      %744 = vst.msk [vmem:[%s203 + $0xe8] sm:$0xff] %vm714, %v711
      %745 = vst.msk [vmem:[%s203 + $0xf0] sm:$0xff] %vm714, %v712
      %746 = vst.msk [vmem:[%s203 + $0xf8] sm:$0xff] %vm714, %v713
      %s747 = smul.u32 32, %s16
      %p748 = scmp.lt.s32.totalorder %s747, 63
      %s749 = scalar_select %p748, %s747, 63
      %s750 = smul.addr %s749, 8
      %s751 = scalar_lea.vmem %s4, %s750
      // Predicated region
      $region37: #{deform_conv_forward.2} parent=35 // pred_check
        %p752 = pneg %p123
      $region38: #{deform_conv_forward.2} parent=35 // pred_check_branch
        %754 = sbr.rel (%p752) target = $region40
      $region39: #{deform_conv_forward.2} parent=35 // pred_region
        %s755 = smul.u32 32, %s16
      $region40: #{deform_conv_forward.2} parent=35 // pred_fallthru
        _
    $region36: #{deform_conv_forward.2} parent=5 // pred_fallthru
      _
    %p756 = scmp.le.s32.totalorder 2, %s11
    // Predicated region
    $region41: #{deform_conv_forward.2} parent=5 // pred_check
      %p757 = pneg %p756
    $region42: #{deform_conv_forward.2} parent=5 // pred_check_branch
      %759 = sbr.rel (%p757) target = $region44
    $region43: #{deform_conv_forward.2} parent=5 // pred_region
      %s760 = ssub.s32 %s11, 2
      // Predicated region
      $region45: #{deform_conv_forward.2} parent=43 // pred_check
        %p761 = pneg %p129
      $region46: #{deform_conv_forward.2} parent=43 // pred_check_branch
        %763 = sbr.rel (%p761) target = $region48
      $region47: #{deform_conv_forward.2} parent=43 // pred_region
        %s764 = smul.u32 32, %s17
        %p765 = scmp.lt.s32.totalorder %s764, 63
        %s766 = scalar_select %p765, %s764, 63
        %s767 = smul.addr %s766, 8
        %s768 = scalar_lea.vmem %s4, %s767
      $region48: #{deform_conv_forward.2} parent=43 // pred_fallthru
        _
    $region44: #{deform_conv_forward.2} parent=5 // pred_fallthru
      _
  $region6: #{deform_conv_forward.2} parent=0 // loop_footer
    %s15 = sadd.s32 1, %s11
  $region7: #{deform_conv_forward.2} parent=0 // loop_footer_branch
    %10 = sbr.rel target = $region3
  $region8: #{deform_conv_forward.2} parent=0 // loop_exit
    _

// kernel: deform_conv_forward.3
$region0: #{deform_conv_forward.3}
  #allocation0 [shape = 'u32[]', space=smem, size = 0x4, offset = 0x4, fixed_abs, tag = 'smem constant byte address 0x4 - core index']
  #allocation1 [shape = 'u32[144,128]{1,0:T(1,128)}', space=vmem, size = 0x12000, scoped, tag = 'internal scratch']
  %s0 = inlined_call_operand.vmem [shape: f32[512,144], index: 0, kind: input, shape index: {}]
  %s1 = inlined_call_operand.vmem [shape: f32[144,16], index: 1, kind: input, shape index: {}]
  %s2 = inlined_call_operand.vmem [shape: f32[1,16], index: 2, kind: input, shape index: {}]
  %s3 = inlined_call_operand.vmem [shape: f32[512,16], index: 3, kind: output, shape index: {}]
  %s4 = sld [smem:[#allocation0]]
  $region45: #{deform_conv_forward.3} parent=0
    _
  %s6 = ssub.s32 1, %s4
  %s7 = scalar_select 0, %s6, %s4
  loop: start=0, step=1, limit=4
  $region2: #{deform_conv_forward.3} parent=0 // loop_pre_header
    _
  $region3: #{deform_conv_forward.3} parent=0 // loop_header
    %s9 = sphi 0, %s13
    %p10 = scmp.ge.s32.totalorder %s9, 4
    %s19 = sphi 0, %s21
    %s22 = sphi 0, %s19
    %s23 = sphi 0, %s22
    %s39 = sphi 0, %s23
    %s43 = sphi 0, %s43
    %s45 = sphi 0, %s43
    %s46 = sphi 0, %s45
    %s60 = sphi 0, %s46
    %s64 = sphi 0, %s64
    %s66 = sphi 0, %s64
    %s67 = sphi 0, %s66
    %s81 = sphi 0, %s67
    %s87 = sphi 0, %s89
    %s90 = sphi 0, %s87
    %s91 = sphi 0, %s90
    %s107 = sphi 0, %s91
  $region4: #{deform_conv_forward.3} parent=0 // loop_header_branch
    %12 = sbr.rel (%p10) target = $region8
  $region5: #{deform_conv_forward.3} parent=0 // loop_body
    %s14 = ssub.s32 %s9, 1
    %s15 = ssub.s32 %s9, 2
    %s16 = sadd.s32 %s9, 1
    %s17 = ssub.s32 %s9, %s16
    %p18 = scmp.eq.s32.totalorder %s17, 0
    %s20 = sadd.s32 %s19, 1
    %s21 = scalar_select %p18, %s19, %s20
    %p24 = pneg %p18
    %p25 = scmp.eq.s32.totalorder %s9, 1
    %p26 = por %p24, %p25
    %p27 = scmp.ne.s32.totalorder %s19, %s22
    %p28 = scmp.eq.s32.totalorder %s9, 0
    %p29 = por %p27, %p28
    %p30 = scmp.ne.s32.totalorder %s19, %s22
    %p31 = scmp.eq.s32.totalorder %s14, 1
    %p32 = por %p30, %p31
    %p33 = scmp.ne.s32.totalorder %s22, %s23
    %p34 = scmp.eq.s32.totalorder %s14, 0
    %p35 = por %p33, %p34
    %p36 = scmp.ne.s32.totalorder %s22, %s23
    %p37 = scmp.eq.s32.totalorder %s15, 1
    %p38 = por %p36, %p37
    %p40 = scmp.ne.s32.totalorder %s23, %s39
    %p41 = scmp.eq.s32.totalorder %s15, 0
    %p42 = por %p40, %p41
    %s44 = sadd.s32 %s43, 1
    %p47 = scmp.eq.s32.totalorder %s9, 1
    %p48 = scmp.ne.s32.totalorder %s43, %s45
    %p49 = scmp.eq.s32.totalorder %s9, 0
    %p50 = por %p48, %p49
    %p51 = scmp.ne.s32.totalorder %s43, %s45
    %p52 = scmp.eq.s32.totalorder %s14, 1
    %p53 = por %p51, %p52
    %p54 = scmp.ne.s32.totalorder %s45, %s46
    %p55 = scmp.eq.s32.totalorder %s14, 0
    %p56 = por %p54, %p55
    %p57 = scmp.ne.s32.totalorder %s45, %s46
    %p58 = scmp.eq.s32.totalorder %s15, 1
    %p59 = por %p57, %p58
    %p61 = scmp.ne.s32.totalorder %s46, %s60
    %p62 = scmp.eq.s32.totalorder %s15, 0
    %p63 = por %p61, %p62
    %s65 = sadd.s32 %s64, 1
    %p68 = scmp.eq.s32.totalorder %s9, 1
    %p69 = scmp.ne.s32.totalorder %s64, %s66
    %p70 = scmp.eq.s32.totalorder %s9, 0
    %p71 = por %p69, %p70
    %p72 = scmp.ne.s32.totalorder %s64, %s66
    %p73 = scmp.eq.s32.totalorder %s14, 1
    %p74 = por %p72, %p73
    %p75 = scmp.ne.s32.totalorder %s66, %s67
    %p76 = scmp.eq.s32.totalorder %s14, 0
    %p77 = por %p75, %p76
    %p78 = scmp.ne.s32.totalorder %s66, %s67
    %p79 = scmp.eq.s32.totalorder %s15, 1
    %p80 = por %p78, %p79
    %p82 = scmp.ne.s32.totalorder %s67, %s81
    %p83 = scmp.eq.s32.totalorder %s15, 0
    %p84 = por %p82, %p83
    %s85 = ssub.s32 %s9, %s16
    %p86 = scmp.eq.s32.totalorder %s85, 0
    %s88 = sadd.s32 %s87, 1
    %s89 = scalar_select %p86, %s87, %s88
    %p92 = pneg %p86
    %p93 = scmp.eq.s32.totalorder %s9, 1
    %p94 = por %p92, %p93
    %p95 = scmp.ne.s32.totalorder %s87, %s90
    %p96 = scmp.eq.s32.totalorder %s9, 0
    %p97 = por %p95, %p96
    %p98 = scmp.ne.s32.totalorder %s87, %s90
    %p99 = scmp.eq.s32.totalorder %s14, 1
    %p100 = por %p98, %p99
    %p101 = scmp.ne.s32.totalorder %s90, %s91
    %p102 = scmp.eq.s32.totalorder %s14, 0
    %p103 = por %p101, %p102
    %p104 = scmp.ne.s32.totalorder %s90, %s91
    %p105 = scmp.eq.s32.totalorder %s15, 1
    %p106 = por %p104, %p105
    %p108 = scmp.ne.s32.totalorder %s91, %s107
    %p109 = scmp.eq.s32.totalorder %s15, 0
    %p110 = por %p108, %p109
    %p111 = scmp.le.s32.totalorder 1, %s9
    %p112 = scmp.lt.s32.totalorder %s9, 3
    %p113 = pnand %p111, %p112
    %p114 = pneg %p113
    // Predicated region
    $region9: #{deform_conv_forward.3} parent=5 // pred_check
      _
    $region10: #{deform_conv_forward.3} parent=5 // pred_check_branch
      %116 = sbr.rel (%p113) target = $region12
    $region11: #{deform_conv_forward.3} parent=5 // pred_region
      %s117 = ssub.s32 %s9, 1
      // Predicated region
      $region13: #{deform_conv_forward.3} parent=11 // pred_check
        %p118 = pneg %p56
      $region14: #{deform_conv_forward.3} parent=11 // pred_check_branch
        %120 = sbr.rel (%p118) target = $region16
      $region15: #{deform_conv_forward.3} parent=11 // pred_region
        _
      $region16: #{deform_conv_forward.3} parent=11 // pred_fallthru
        _
      // Predicated region
      $region17: #{deform_conv_forward.3} parent=11 // pred_check
        %p121 = pneg %p77
      $region18: #{deform_conv_forward.3} parent=11 // pred_check_branch
        %123 = sbr.rel (%p121) target = $region20
      $region19: #{deform_conv_forward.3} parent=11 // pred_region
        _
      $region20: #{deform_conv_forward.3} parent=11 // pred_fallthru
        _
    $region12: #{deform_conv_forward.3} parent=5 // pred_fallthru
      _
    %p124 = scmp.lt.s32.totalorder %s9, 2
    // Predicated region
    $region21: #{deform_conv_forward.3} parent=5 // pred_check
      %p125 = pneg %p124
    $region22: #{deform_conv_forward.3} parent=5 // pred_check_branch
      %127 = sbr.rel (%p125) target = $region24
    $region23: #{deform_conv_forward.3} parent=5 // pred_region
      // Predicated region
      $region25: #{deform_conv_forward.3} parent=23 // pred_check
        %p128 = pneg %p29
      $region26: #{deform_conv_forward.3} parent=23 // pred_check_branch
        %130 = sbr.rel (%p128) target = $region28
      $region27: #{deform_conv_forward.3} parent=23 // pred_region
        %s131 = smul.u32 32, %s9
        %p132 = scmp.lt.s32.totalorder %s131, 63
        %s133 = scalar_select %p132, %s131, 63
        %s134 = smul.addr %s133, 2
        %s135 = smul.addr %s134, 8
        %s136 = scalar_lea.vmem %s0, %s135
        %s137 = smul.u32 32, %s9
      $region28: #{deform_conv_forward.3} parent=23 // pred_fallthru
        _
    $region24: #{deform_conv_forward.3} parent=5 // pred_fallthru
      _
    %p138 = scmp.le.s32.totalorder 1, %s9
    %p139 = scmp.lt.s32.totalorder %s9, 3
    %p140 = pnand %p138, %p139
    %p141 = pneg %p140
    // Predicated region
    $region29: #{deform_conv_forward.3} parent=5 // pred_check
      _
    $region30: #{deform_conv_forward.3} parent=5 // pred_check_branch
      %143 = sbr.rel (%p140) target = $region32
    $region31: #{deform_conv_forward.3} parent=5 // pred_region
      %s144 = ssub.s32 %s9, 1
      %s145 = smul.u32 32, %s14
      %p146 = scmp.lt.s32.totalorder %s145, 63
      %s147 = scalar_select %p146, %s145, 63
      %s148 = smul.addr %s147, 2
      %s149 = smul.addr %s148, 8
      %s150 = scalar_lea.vmem %s0, %s149
      %p151 = pneg %p35
      %p152 = pneg %p32
      %p153 = pneg %p56
      %p154 = pneg %p53
      %p155 = pneg %p77
      %p156 = pneg %p74
      %p157 = pneg %p103
      %p158 = pneg %p100
      %s159 = smul.u32 32, %s14
      %p160 = scmp.lt.s32.totalorder %s159, 63
      %s161 = scalar_select %p160, %s159, 63
      %s162 = smul.addr %s161, 8
      %s163 = scalar_lea.vmem %s3, %s162
      %s164 = smul.u32 32, %s14
      %p165 = scmp.lt.s32.totalorder %s164, 63
      %s166 = scalar_select %p165, %s164, 63
      %s167 = smul.addr %s166, 2
      %s168 = smul.addr %s167, 8
      %s169 = scalar_lea.vmem %s0, %s168
      %s170 = smul.u32 32, %s14
      %s171 = smul.u32 32, %s14
      %p172 = scmp.lt.s32.totalorder %s171, 63
      %s173 = scalar_select %p172, %s171, 63
      %s174 = smul.addr %s173, 8
      %s175 = scalar_lea.vmem %s3, %s174
      %s176 = smul.u32 32, %s14
      %v177 = vld [vmem:[%s169] sm:$0xff]
      %v178 = vld [vmem:[%s169 + $0x8] sm:$0xff]
      %v179 = vld [vmem:[%s169 + $0x10] sm:$0xff]
      %v180 = vld [vmem:[%s169 + $0x18] sm:$0xff]
      %v181 = vld [vmem:[%s169 + $0x20] sm:$0xff]
      %v182 = vld [vmem:[%s169 + $0x28] sm:$0xff]
      %v183 = vld [vmem:[%s169 + $0x30] sm:$0xff]
      %v184 = vld [vmem:[%s169 + $0x38] sm:$0xff]
      %v185 = vld [vmem:[%s169 + $0x40] sm:$0xff]
      %v186 = vld [vmem:[%s169 + $0x48] sm:$0xff]
      %v187 = vld [vmem:[%s169 + $0x50] sm:$0xff]
      %v188 = vld [vmem:[%s169 + $0x58] sm:$0xff]
      %v189 = vld [vmem:[%s169 + $0x60] sm:$0xff]
      %v190 = vld [vmem:[%s169 + $0x68] sm:$0xff]
      %v191 = vld [vmem:[%s169 + $0x70] sm:$0xff]
      %v192 = vld [vmem:[%s169 + $0x78] sm:$0xff]
      %v193 = vld [vmem:[%s169 + $0x80] sm:$0xff]
      %v194 = vld [vmem:[%s169 + $0x88] sm:$0xff]
      %v195 = vld [vmem:[%s169 + $0x90] sm:$0xff]
      %v196 = vld [vmem:[%s169 + $0x98] sm:$0xff]
      %v197 = vld [vmem:[%s169 + $0xa0] sm:$0xff]
      %v198 = vld [vmem:[%s169 + $0xa8] sm:$0xff]
      %v199 = vld [vmem:[%s169 + $0xb0] sm:$0xff]
      %v200 = vld [vmem:[%s169 + $0xb8] sm:$0xff]
      %v201 = vld [vmem:[%s169 + $0xc0] sm:$0xff]
      %v202 = vld [vmem:[%s169 + $0xc8] sm:$0xff]
      %v203 = vld [vmem:[%s169 + $0xd0] sm:$0xff]
      %v204 = vld [vmem:[%s169 + $0xd8] sm:$0xff]
      %v205 = vld [vmem:[%s169 + $0xe0] sm:$0xff]
      %v206 = vld [vmem:[%s169 + $0xe8] sm:$0xff]
      %v207 = vld [vmem:[%s169 + $0xf0] sm:$0xff]
      %v208 = vld [vmem:[%s169 + $0xf8] sm:$0xff]
      %v209 = vld [vmem:[%s169 + $0x100] sm:$0xff]
      %v210 = vld [vmem:[%s169 + $0x108] sm:$0xff]
      %v211 = vld [vmem:[%s169 + $0x110] sm:$0xff]
      %v212 = vld [vmem:[%s169 + $0x118] sm:$0xff]
      %v213 = vld [vmem:[%s169 + $0x120] sm:$0xff]
      %v214 = vld [vmem:[%s169 + $0x128] sm:$0xff]
      %v215 = vld [vmem:[%s169 + $0x130] sm:$0xff]
      %v216 = vld [vmem:[%s169 + $0x138] sm:$0xff]
      %v217 = vld [vmem:[%s169 + $0x140] sm:$0xff]
      %v218 = vld [vmem:[%s169 + $0x148] sm:$0xff]
      %v219 = vld [vmem:[%s169 + $0x150] sm:$0xff]
      %v220 = vld [vmem:[%s169 + $0x158] sm:$0xff]
      %v221 = vld [vmem:[%s169 + $0x160] sm:$0xff]
      %v222 = vld [vmem:[%s169 + $0x168] sm:$0xff]
      %v223 = vld [vmem:[%s169 + $0x170] sm:$0xff]
      %v224 = vld [vmem:[%s169 + $0x178] sm:$0xff]
      %v225 = vld [vmem:[%s169 + $0x180] sm:$0xff]
      %v226 = vld [vmem:[%s169 + $0x188] sm:$0xff]
      %v227 = vld [vmem:[%s169 + $0x190] sm:$0xff]
      %v228 = vld [vmem:[%s169 + $0x198] sm:$0xff]
      %v229 = vld [vmem:[%s169 + $0x1a0] sm:$0xff]
      %v230 = vld [vmem:[%s169 + $0x1a8] sm:$0xff]
      %v231 = vld [vmem:[%s169 + $0x1b0] sm:$0xff]
      %v232 = vld [vmem:[%s169 + $0x1b8] sm:$0xff]
      %v233 = vld [vmem:[%s169 + $0x1c0] sm:$0xff]
      %v234 = vld [vmem:[%s169 + $0x1c8] sm:$0xff]
      %v235 = vld [vmem:[%s169 + $0x1d0] sm:$0xff]
      %v236 = vld [vmem:[%s169 + $0x1d8] sm:$0xff]
      %v237 = vld [vmem:[%s169 + $0x1e0] sm:$0xff]
      %v238 = vld [vmem:[%s169 + $0x1e8] sm:$0xff]
      %v239 = vld [vmem:[%s169 + $0x1f0] sm:$0xff]
      %v240 = vld [vmem:[%s169 + $0x1f8] sm:$0xff]
      %v241 = vld [vmem:[%s1] sm:$0xff]
      %v242 = vld [vmem:[%s1 + $0x8] sm:$0xff]
      %v243 = vld [vmem:[%s1 + $0x10] sm:$0xff]
      %v244 = vld [vmem:[%s1 + $0x18] sm:$0xff]
      %v245 = vld [vmem:[%s1 + $0x20] sm:$0xff]
      %v246 = vld [vmem:[%s1 + $0x28] sm:$0xff]
      %v247 = vld [vmem:[%s1 + $0x30] sm:$0xff]
      %v248 = vld [vmem:[%s1 + $0x38] sm:$0xff]
      %v249 = vld [vmem:[%s1 + $0x40] sm:$0xff]
      %v250 = vld [vmem:[%s1 + $0x48] sm:$0xff]
      %v251 = vld [vmem:[%s1 + $0x50] sm:$0xff]
      %v252 = vld [vmem:[%s1 + $0x58] sm:$0xff]
      %v253 = vld [vmem:[%s1 + $0x60] sm:$0xff]
      %v254 = vld [vmem:[%s1 + $0x68] sm:$0xff]
      %v255 = vld [vmem:[%s1 + $0x70] sm:$0xff]
      %v256 = vld [vmem:[%s1 + $0x78] sm:$0xff]
      %v257 = vld [vmem:[%s1 + $0x80] sm:$0xff]
      %v258 = vld [vmem:[%s1 + $0x88] sm:$0xff]
      %v259 = vld [vmem:[%s2] sm:$0x1]
      %v261 = vlaneseq
      %v262 = vshrl.u32 %v261, 7
      %v263 = vsub.s32 0, %v262
      %v264 = vrot.slane %v259, %v263
      %vm266 = vcmask 130048
      %v268 = vsel %vm266, %v178, 0
      %v271 = vsel %vm266, %v180, 0
      %v274 = vsel %vm266, %v182, 0
      %v277 = vsel %vm266, %v184, 0
      %v280 = vsel %vm266, %v186, 0
      %v283 = vsel %vm266, %v188, 0
      %v286 = vsel %vm266, %v190, 0
      %v289 = vsel %vm266, %v192, 0
      %v292 = vsel %vm266, %v194, 0
      %v295 = vsel %vm266, %v196, 0
      %v298 = vsel %vm266, %v198, 0
      %v301 = vsel %vm266, %v200, 0
      %v304 = vsel %vm266, %v202, 0
      %v307 = vsel %vm266, %v204, 0
      %v310 = vsel %vm266, %v206, 0
      %v313 = vsel %vm266, %v208, 0
      %v316 = vsel %vm266, %v210, 0
      %v319 = vsel %vm266, %v212, 0
      %v322 = vsel %vm266, %v214, 0
      %v325 = vsel %vm266, %v216, 0
      %v328 = vsel %vm266, %v218, 0
      %v331 = vsel %vm266, %v220, 0
      %v334 = vsel %vm266, %v222, 0
      %v337 = vsel %vm266, %v224, 0
      %v340 = vsel %vm266, %v226, 0
      %v343 = vsel %vm266, %v228, 0
      %v346 = vsel %vm266, %v230, 0
      %v349 = vsel %vm266, %v232, 0
      %v352 = vsel %vm266, %v234, 0
      %v355 = vsel %vm266, %v236, 0
      %v358 = vsel %vm266, %v238, 0
      %v361 = vsel %vm266, %v240, 0
      %363 = vmatprep.subr.mxu0 0.0
      %364 = vmatpush1.msra.mxu0 %v241
      %365 = vmatprep.subr.mxu0 0.0
      %366 = vmatpush1.msra.mxu0 %v242
      %367 = vmatprep.subr.mxu0 0.0
      %368 = vmatpush1.msra.mxu0 %v243
      %369 = vmatprep.subr.mxu0 0.0
      %370 = vmatpush1.msra.mxu0 %v244
      %371 = vmatprep.subr.mxu0 0.0
      %372 = vmatpush1.msra.mxu0 %v245
      %373 = vmatprep.subr.mxu0 0.0
      %374 = vmatpush1.msra.mxu0 %v246
      %375 = vmatprep.subr.mxu0 0.0
      %376 = vmatpush1.msra.mxu0 %v247
      %377 = vmatprep.subr.mxu0 0.0
      %378 = vmatpush1.msra.mxu0 %v248
      %379 = vmatprep.subr.mxu0 0.0
      %380 = vmatpush1.msra.mxu0 %v249
      %381 = vmatprep.subr.mxu0 0.0
      %382 = vmatpush1.msra.mxu0 %v250
      %383 = vmatprep.subr.mxu0 0.0
      %384 = vmatpush1.msra.mxu0 %v251
      %385 = vmatprep.subr.mxu0 0.0
      %386 = vmatpush1.msra.mxu0 %v252
      %387 = vmatprep.subr.mxu0 0.0
      %388 = vmatpush1.msra.mxu0 %v253
      %389 = vmatprep.subr.mxu0 0.0
      %390 = vmatpush1.msra.mxu0 %v254
      %391 = vmatprep.subr.mxu0 0.0
      %392 = vmatpush1.msra.mxu0 %v255
      %393 = vmatprep.subr.mxu0 0.0
      %394 = vmatpush1.msra.mxu0 %v256
      %395 = vmatprep.subr.mxu0 0.0
      %396 = vmatpush1.msra.mxu0 %v257
      %397 = vmatprep.subr.mxu0 0.0
      %398 = vmatpush1.msra.mxu0 %v258
      %399 = vmatprep.subr.mxu0 0.0
      %400 = vmatpush1.msra.mxu0 0.0
      %401 = vmatprep.subr.mxu0 0.0
      %402 = vmatpush1.msra.mxu0 0.0
      %403 = vmatprep.subr.mxu0 0.0
      %404 = vmatpush1.msra.mxu0 0.0
      %405 = vmatprep.subr.mxu0 0.0
      %406 = vmatpush1.msra.mxu0 0.0
      %407 = vmatprep.subr.mxu0 0.0
      %408 = vmatpush1.msra.mxu0 0.0
      %409 = vmatprep.subr.mxu0 0.0
      %410 = vmatpush1.msra.mxu0 0.0
      %411 = vmatprep.subr.mxu0 0.0
      %412 = vmatpush1.msra.mxu0 0.0
      %413 = vmatprep.subr.mxu0 0.0
      %414 = vmatpush1.msra.mxu0 0.0
      %415 = vmatprep.subr.mxu0 0.0
      %416 = vmatpush1.msra.mxu0 0.0
      %417 = vmatprep.subr.mxu0 0.0
      %418 = vmatpush1.msra.mxu0 0.0
      %419 = vmatprep.subr.mxu0 0.0
      %420 = vmatpush1.msra.mxu0 0.0
      %421 = vmatprep.subr.mxu0 0.0
      %422 = vmatpush1.msra.mxu0 0.0
      %423 = vmatprep.subr.mxu0 0.0
      %424 = vmatpush1.msra.mxu0 0.0
      %425 = vmatprep.subr.mxu0 0.0
      %426 = vmatpush1.msra.mxu0 0.0
      %427 = vmatprep.mubr.f32.mxu0 %v268
      %428 = vmatmul.mubr.f32.gmra.mrb[0].mxu0 %v177
      %v429 = vpop.f32.mrb[0].mxu0
      %v430 = vadd.f32 %v264, %v429
      %v431 = vpop.f32.mrb[0].mxu0
      %432 = vmatprep.mubr.f32.mxu0 %v271
      %433 = vmatmul.mubr.f32.gmra.mrb[0].mxu0 %v179
      %v434 = vpop.f32.mrb[0].mxu0
      %v435 = vadd.f32 %v264, %v434
      %v436 = vpop.f32.mrb[0].mxu0
      %437 = vmatprep.mubr.f32.mxu0 %v274
      %438 = vmatmul.mubr.f32.gmra.mrb[0].mxu0 %v181
      %v439 = vpop.f32.mrb[0].mxu0
      %v440 = vadd.f32 %v264, %v439
      %v441 = vpop.f32.mrb[0].mxu0
      %442 = vmatprep.mubr.f32.mxu0 %v277
      %443 = vmatmul.mubr.f32.gmra.mrb[0].mxu0 %v183
      %v444 = vpop.f32.mrb[0].mxu0
      %v445 = vadd.f32 %v264, %v444
      %v446 = vpop.f32.mrb[0].mxu0
      %447 = vmatprep.mubr.f32.mxu0 %v280
      %448 = vmatmul.mubr.f32.gmra.mrb[0].mxu0 %v185
      %v449 = vpop.f32.mrb[0].mxu0
      %v450 = vadd.f32 %v264, %v449
      %v451 = vpop.f32.mrb[0].mxu0
      %452 = vmatprep.mubr.f32.mxu0 %v283
      %453 = vmatmul.mubr.f32.gmra.mrb[0].mxu0 %v187
      %v454 = vpop.f32.mrb[0].mxu0
      %v455 = vadd.f32 %v264, %v454
      %v456 = vpop.f32.mrb[0].mxu0
      %457 = vmatprep.mubr.f32.mxu0 %v286
      %458 = vmatmul.mubr.f32.gmra.mrb[0].mxu0 %v189
      %v459 = vpop.f32.mrb[0].mxu0
      %v460 = vadd.f32 %v264, %v459
      %v461 = vpop.f32.mrb[0].mxu0
      %462 = vmatprep.mubr.f32.mxu0 %v289
      %463 = vmatmul.mubr.f32.gmra.mrb[0].mxu0 %v191
      %v464 = vpop.f32.mrb[0].mxu0
      %v465 = vadd.f32 %v264, %v464
      %v466 = vpop.f32.mrb[0].mxu0
      %467 = vmatprep.mubr.f32.mxu0 %v292
      %468 = vmatmul.mubr.f32.gmra.mrb[0].mxu0 %v193
      %v469 = vpop.f32.mrb[0].mxu0
      %v470 = vadd.f32 %v264, %v469
      %v471 = vpop.f32.mrb[0].mxu0
      %472 = vmatprep.mubr.f32.mxu0 %v295
      %473 = vmatmul.mubr.f32.gmra.mrb[0].mxu0 %v195
      %v474 = vpop.f32.mrb[0].mxu0
      %v475 = vadd.f32 %v264, %v474
      %v476 = vpop.f32.mrb[0].mxu0
      %477 = vmatprep.mubr.f32.mxu0 %v298
      %478 = vmatmul.mubr.f32.gmra.mrb[0].mxu0 %v197
      %v479 = vpop.f32.mrb[0].mxu0
      %v480 = vadd.f32 %v264, %v479
      %v481 = vpop.f32.mrb[0].mxu0
      %482 = vmatprep.mubr.f32.mxu0 %v301
      %483 = vmatmul.mubr.f32.gmra.mrb[0].mxu0 %v199
      %v484 = vpop.f32.mrb[0].mxu0
      %v485 = vadd.f32 %v264, %v484
      %v486 = vpop.f32.mrb[0].mxu0
      %487 = vmatprep.mubr.f32.mxu0 %v304
      %488 = vmatmul.mubr.f32.gmra.mrb[0].mxu0 %v201
      %v489 = vpop.f32.mrb[0].mxu0
      %v490 = vadd.f32 %v264, %v489
      %v491 = vpop.f32.mrb[0].mxu0
      %492 = vmatprep.mubr.f32.mxu0 %v307
      %493 = vmatmul.mubr.f32.gmra.mrb[0].mxu0 %v203
      %v494 = vpop.f32.mrb[0].mxu0
      %v495 = vadd.f32 %v264, %v494
      %v496 = vpop.f32.mrb[0].mxu0
      %497 = vmatprep.mubr.f32.mxu0 %v310
      %498 = vmatmul.mubr.f32.gmra.mrb[0].mxu0 %v205
      %v499 = vpop.f32.mrb[0].mxu0
      %v500 = vadd.f32 %v264, %v499
      %v501 = vpop.f32.mrb[0].mxu0
      %502 = vmatprep.mubr.f32.mxu0 %v313
      %503 = vmatmul.mubr.f32.gmra.mrb[0].mxu0 %v207
      %v504 = vpop.f32.mrb[0].mxu0
      %v505 = vadd.f32 %v264, %v504
      %v506 = vpop.f32.mrb[0].mxu0
      %507 = vmatprep.mubr.f32.mxu0 %v316
      %508 = vmatmul.mubr.f32.gmra.mrb[0].mxu0 %v209
      %v509 = vpop.f32.mrb[0].mxu0
      %v510 = vadd.f32 %v264, %v509
      %v511 = vpop.f32.mrb[0].mxu0
      %512 = vmatprep.mubr.f32.mxu0 %v319
      %513 = vmatmul.mubr.f32.gmra.mrb[0].mxu0 %v211
      %v514 = vpop.f32.mrb[0].mxu0
      %v515 = vadd.f32 %v264, %v514
      %v516 = vpop.f32.mrb[0].mxu0
      %517 = vmatprep.mubr.f32.mxu0 %v322
      %518 = vmatmul.mubr.f32.gmra.mrb[0].mxu0 %v213
      %v519 = vpop.f32.mrb[0].mxu0
      %v520 = vadd.f32 %v264, %v519
      %v521 = vpop.f32.mrb[0].mxu0
      %522 = vmatprep.mubr.f32.mxu0 %v325
      %523 = vmatmul.mubr.f32.gmra.mrb[0].mxu0 %v215
      %v524 = vpop.f32.mrb[0].mxu0
      %v525 = vadd.f32 %v264, %v524
      %v526 = vpop.f32.mrb[0].mxu0
      %527 = vmatprep.mubr.f32.mxu0 %v328
      %528 = vmatmul.mubr.f32.gmra.mrb[0].mxu0 %v217
      %v529 = vpop.f32.mrb[0].mxu0
      %v530 = vadd.f32 %v264, %v529
      %v531 = vpop.f32.mrb[0].mxu0
      %532 = vmatprep.mubr.f32.mxu0 %v331
      %533 = vmatmul.mubr.f32.gmra.mrb[0].mxu0 %v219
      %v534 = vpop.f32.mrb[0].mxu0
      %v535 = vadd.f32 %v264, %v534
      %v536 = vpop.f32.mrb[0].mxu0
      %537 = vmatprep.mubr.f32.mxu0 %v334
      %538 = vmatmul.mubr.f32.gmra.mrb[0].mxu0 %v221
      %v539 = vpop.f32.mrb[0].mxu0
      %v540 = vadd.f32 %v264, %v539
      %v541 = vpop.f32.mrb[0].mxu0
      %542 = vmatprep.mubr.f32.mxu0 %v337
      %543 = vmatmul.mubr.f32.gmra.mrb[0].mxu0 %v223
      %v544 = vpop.f32.mrb[0].mxu0
      %v545 = vadd.f32 %v264, %v544
      %v546 = vpop.f32.mrb[0].mxu0
      %547 = vmatprep.mubr.f32.mxu0 %v340
      %548 = vmatmul.mubr.f32.gmra.mrb[0].mxu0 %v225
      %v549 = vpop.f32.mrb[0].mxu0
      %v550 = vadd.f32 %v264, %v549
      %v551 = vpop.f32.mrb[0].mxu0
      %552 = vmatprep.mubr.f32.mxu0 %v343
      %553 = vmatmul.mubr.f32.gmra.mrb[0].mxu0 %v227
      %v554 = vpop.f32.mrb[0].mxu0
      %v555 = vadd.f32 %v264, %v554
      %v556 = vpop.f32.mrb[0].mxu0
      %557 = vmatprep.mubr.f32.mxu0 %v346
      %558 = vmatmul.mubr.f32.gmra.mrb[0].mxu0 %v229
      %v559 = vpop.f32.mrb[0].mxu0
      %v560 = vadd.f32 %v264, %v559
      %v561 = vpop.f32.mrb[0].mxu0
      %562 = vmatprep.mubr.f32.mxu0 %v349
      %563 = vmatmul.mubr.f32.gmra.mrb[0].mxu0 %v231
      %v564 = vpop.f32.mrb[0].mxu0
      %v565 = vadd.f32 %v264, %v564
      %v566 = vpop.f32.mrb[0].mxu0
      %567 = vmatprep.mubr.f32.mxu0 %v352
      %568 = vmatmul.mubr.f32.gmra.mrb[0].mxu0 %v233
      %v569 = vpop.f32.mrb[0].mxu0
      %v570 = vadd.f32 %v264, %v569
      %v571 = vpop.f32.mrb[0].mxu0
      %572 = vmatprep.mubr.f32.mxu0 %v355
      %573 = vmatmul.mubr.f32.gmra.mrb[0].mxu0 %v235
      %v574 = vpop.f32.mrb[0].mxu0
      %v575 = vadd.f32 %v264, %v574
      %v576 = vpop.f32.mrb[0].mxu0
      %577 = vmatprep.mubr.f32.mxu0 %v358
      %578 = vmatmul.mubr.f32.gmra.mrb[0].mxu0 %v237
      %v579 = vpop.f32.mrb[0].mxu0
      %v580 = vadd.f32 %v264, %v579
      %v581 = vpop.f32.mrb[0].mxu0
      %582 = vmatprep.mubr.f32.mxu0 %v361
      %583 = vmatmul.mubr.f32.gmra.mrb[0].mxu0 %v239
      %v584 = vpop.f32.mrb[0].mxu0
      %v585 = vadd.f32 %v264, %v584
      %v586 = vpop.f32.mrb[0].mxu0
      %587 = vdwg.mxu0
      %588 = vst.msk [vmem:[%s175] sm:$0xff] %vm266, %v430
      %589 = vst.msk [vmem:[%s175 + $0x8] sm:$0xff] %vm266, %v435
      %590 = vst.msk [vmem:[%s175 + $0x10] sm:$0xff] %vm266, %v440
      %591 = vst.msk [vmem:[%s175 + $0x18] sm:$0xff] %vm266, %v445
      %592 = vst.msk [vmem:[%s175 + $0x20] sm:$0xff] %vm266, %v450
      %593 = vst.msk [vmem:[%s175 + $0x28] sm:$0xff] %vm266, %v455
      %594 = vst.msk [vmem:[%s175 + $0x30] sm:$0xff] %vm266, %v460
      %595 = vst.msk [vmem:[%s175 + $0x38] sm:$0xff] %vm266, %v465
      %596 = vst.msk [vmem:[%s175 + $0x40] sm:$0xff] %vm266, %v470
      %597 = vst.msk [vmem:[%s175 + $0x48] sm:$0xff] %vm266, %v475
      %598 = vst.msk [vmem:[%s175 + $0x50] sm:$0xff] %vm266, %v480
      %599 = vst.msk [vmem:[%s175 + $0x58] sm:$0xff] %vm266, %v485
      %600 = vst.msk [vmem:[%s175 + $0x60] sm:$0xff] %vm266, %v490
      %601 = vst.msk [vmem:[%s175 + $0x68] sm:$0xff] %vm266, %v495
      %602 = vst.msk [vmem:[%s175 + $0x70] sm:$0xff] %vm266, %v500
      %603 = vst.msk [vmem:[%s175 + $0x78] sm:$0xff] %vm266, %v505
      %604 = vst.msk [vmem:[%s175 + $0x80] sm:$0xff] %vm266, %v510
      %605 = vst.msk [vmem:[%s175 + $0x88] sm:$0xff] %vm266, %v515
      %606 = vst.msk [vmem:[%s175 + $0x90] sm:$0xff] %vm266, %v520
      %607 = vst.msk [vmem:[%s175 + $0x98] sm:$0xff] %vm266, %v525
      %608 = vst.msk [vmem:[%s175 + $0xa0] sm:$0xff] %vm266, %v530
      %609 = vst.msk [vmem:[%s175 + $0xa8] sm:$0xff] %vm266, %v535
      %610 = vst.msk [vmem:[%s175 + $0xb0] sm:$0xff] %vm266, %v540
      %611 = vst.msk [vmem:[%s175 + $0xb8] sm:$0xff] %vm266, %v545
      %612 = vst.msk [vmem:[%s175 + $0xc0] sm:$0xff] %vm266, %v550
      %613 = vst.msk [vmem:[%s175 + $0xc8] sm:$0xff] %vm266, %v555
      %614 = vst.msk [vmem:[%s175 + $0xd0] sm:$0xff] %vm266, %v560
      %615 = vst.msk [vmem:[%s175 + $0xd8] sm:$0xff] %vm266, %v565
      %616 = vst.msk [vmem:[%s175 + $0xe0] sm:$0xff] %vm266, %v570
      %617 = vst.msk [vmem:[%s175 + $0xe8] sm:$0xff] %vm266, %v575
      %618 = vst.msk [vmem:[%s175 + $0xf0] sm:$0xff] %vm266, %v580
      %619 = vst.msk [vmem:[%s175 + $0xf8] sm:$0xff] %vm266, %v585
      %s620 = smul.u32 32, %s14
      %p621 = scmp.lt.s32.totalorder %s620, 63
      %s622 = scalar_select %p621, %s620, 63
      %s623 = smul.addr %s622, 8
      %s624 = scalar_lea.vmem %s3, %s623
      // Predicated region
      $region33: #{deform_conv_forward.3} parent=31 // pred_check
        %p625 = pneg %p100
      $region34: #{deform_conv_forward.3} parent=31 // pred_check_branch
        %627 = sbr.rel (%p625) target = $region36
      $region35: #{deform_conv_forward.3} parent=31 // pred_region
        %s628 = smul.u32 32, %s14
      $region36: #{deform_conv_forward.3} parent=31 // pred_fallthru
        _
    $region32: #{deform_conv_forward.3} parent=5 // pred_fallthru
      _
    %p629 = scmp.le.s32.totalorder 2, %s9
    // Predicated region
    $region37: #{deform_conv_forward.3} parent=5 // pred_check
      %p630 = pneg %p629
    $region38: #{deform_conv_forward.3} parent=5 // pred_check_branch
      %632 = sbr.rel (%p630) target = $region40
    $region39: #{deform_conv_forward.3} parent=5 // pred_region
      %s633 = ssub.s32 %s9, 2
      // Predicated region
      $region41: #{deform_conv_forward.3} parent=39 // pred_check
        %p634 = pneg %p106
      $region42: #{deform_conv_forward.3} parent=39 // pred_check_branch
        %636 = sbr.rel (%p634) target = $region44
      $region43: #{deform_conv_forward.3} parent=39 // pred_region
        %s637 = smul.u32 32, %s15
        %p638 = scmp.lt.s32.totalorder %s637, 63
        %s639 = scalar_select %p638, %s637, 63
        %s640 = smul.addr %s639, 8
        %s641 = scalar_lea.vmem %s3, %s640
      $region44: #{deform_conv_forward.3} parent=39 // pred_fallthru
        _
    $region40: #{deform_conv_forward.3} parent=5 // pred_fallthru
      _
  $region6: #{deform_conv_forward.3} parent=0 // loop_footer
    %s13 = sadd.s32 1, %s9
  $region7: #{deform_conv_forward.3} parent=0 // loop_footer_branch
    %8 = sbr.rel target = $region3
  $region8: #{deform_conv_forward.3} parent=0 // loop_exit
    _

</llo_original>
